<compile_context>
chip_gen: v7x
topology: tpu7x:2x2x1
jax: 0.10.0
libtpu: 0.0.40
codegen_flags: <defaults>
</compile_context>

<pallas_src>
import jax
import jax.numpy as jnp
from jax.experimental import pallas as pl
from jax.experimental.pallas import tpu as pltpu

# ----------------------------- small config ---------------------------------
B = 2            # batch
N = 16           # num_nodes
F_IN = 4         # input_dim
D = 32           # hidden_size
PRE_K = 3        # pre_k (depth of hidden-state history)
PRE_V = 2        # pre_v (how many past states feed the evolution cell)
N_SUPPORTS = 1   # must be 1 (see note above)
K_HOP = 2        # max diffusion step
E_LAYER = 2      # number of GraphConv_ layers in EvolutionCell
NUM_METRICS = K_HOP * N_SUPPORTS + 1
LEAKY_SLOPE = 0.01          # F.leaky_relu_ default
C0 = F_IN + D * PRE_V       # graphconv layer-0 input channels

_VMEM = pltpu.MemorySpace.VMEM
_SMEM = pltpu.MemorySpace.SMEM


# ----------------------------- fused pallas kernel --------------------------
def msdr_fused_kernel(x_ref, hid_ref, sblk_ref,
                      gw0_ref, gb0_ref, gw1_ref, gb1_ref,
                      eaw_ref, aw_ref, R_ref, W_ref, bout_ref,
                      eab_ref, ab_ref,
                      out_ref):
    """Whole MSDRCell forward in one kernel.

    x:    (B*N, C0)        concatenated [inputs | h[-1] | h[-2]], row = (b, n)
    hid:  (B, PRE_K, N, D) hidden-state history
    sblk: (E_LAYER, B*N, B*N) block-diagonal kron(I_B, support_l)
    gw_l: (NUM_METRICS, C_l, D), gb_l: (1, D)   GraphConv_ Linear params
    eaw/aw: (N, D) attention Linear weights, eab/ab: (1, 1) biases (SMEM)
    R:    (PRE_K, N, D), W: (D, D), bout: (N, D)
    out:  (B*N, D)  lane-contiguous output rows (row = (b, n))
    """
    gw_refs = (gw0_ref, gw1_ref)
    gb_refs = (gb0_ref, gb1_ref)

    # -------- EvolutionCell: stacked GraphConv_ layers (batch-wide MXU) -----
    cur = x_ref[...]                                        # (B*N, C)
    layer_outs = []
    for li in range(E_LAYER):
        s_blk = sblk_ref[li]                                # (B*N, B*N)
        w = gw_refs[li]                                     # (M, C, D) ref
        t_km2 = cur                                         # T0
        acc = jnp.dot(t_km2, w[0], preferred_element_type=jnp.float32)
        if NUM_METRICS >= 2:
            t_km1 = jnp.dot(s_blk, t_km2,
                            preferred_element_type=jnp.float32)   # T1
            acc = acc + jnp.dot(t_km1, w[1],
                                preferred_element_type=jnp.float32)
            for m in range(2, NUM_METRICS):
                t_k = 2.0 * jnp.dot(s_blk, t_km1,
                                    preferred_element_type=jnp.float32) - t_km2
                acc = acc + jnp.dot(t_k, w[m],
                                    preferred_element_type=jnp.float32)
                t_km2, t_km1 = t_km1, t_k
        cur = acc + gb_refs[li][...]                        # (B*N, D) + (1, D)
        layer_outs.append(cur)

    # -------- attention helper: softmax over a static list of (B, N, D) ----
    def attention(items, w2d, bias):
        logits = []
        for t in items:
            s = jnp.sum(t * w2d[None, :, :], axis=-1)               # (B, N)
            logits.append(jnp.sum(s, axis=-1, keepdims=True) + bias)  # (B, 1)
        mx = logits[0]
        for lg in logits[1:]:
            mx = jnp.maximum(mx, lg)
        exps = [jnp.exp(lg - mx) for lg in logits]
        den = exps[0]
        for e in exps[1:]:
            den = den + e
        out = None
        for e, t in zip(exps, items):
            contrib = (e / den)[:, :, None] * t                     # (B, N, D)
            out = contrib if out is None else out + contrib
        return out

    # -------- EvolutionCell attention over the E_LAYER layer outputs -------
    evo3 = attention([y.reshape(B, N, D) for y in layer_outs],
                     eaw_ref[...], eab_ref[0, 0])                   # (B, N, D)

    # -------- MSDRCell attention over new_states = hidden + R --------------
    h = hid_ref[...]                                                # (B,K,N,D)
    new_states = [h[:, kk] + R_ref[kk] for kk in range(PRE_K)]
    att3 = attention(new_states, aw_ref[...], ab_ref[0, 0])         # (B, N, D)

    # -------- output = leaky_relu(evo) @ W + b + attention ------------------
    evo_rows = evo3.reshape(B * N, D)
    act = jnp.where(evo_rows >= 0, evo_rows, jnp.float32(LEAKY_SLOPE) * evo_rows)
    y = jnp.dot(act, W_ref[...], preferred_element_type=jnp.float32)  # (B*N, D)
    out3 = y.reshape(B, N, D) + bout_ref[...][None, :, :] + att3
    out_ref[...] = out3.reshape(B * N, D)


def _fused_call(x_rows, hidden, sblk, params):
    in_specs = ([pl.BlockSpec(memory_space=_VMEM)] * 12
                + [pl.BlockSpec(memory_space=_SMEM)] * 2)
    return pl.pallas_call(
        msdr_fused_kernel,
        out_shape=jax.ShapeDtypeStruct((B * N, D), jnp.float32),
        in_specs=in_specs,
        out_specs=pl.BlockSpec(memory_space=_VMEM),
    )(x_rows, hidden, sblk,
      params["gc_w"][0], params["gc_b"][0],
      params["gc_w"][1], params["gc_b"][1],
      params["evo_att_w"], params["att_w"], params["R"],
      params["W"], params["b"],
      params["evo_att_b"], params["att_b"])


# ----------------------------- parameters -----------------------------------
def init_params(key):
    keys = jax.random.split(key, 7 + 2 * E_LAYER)
    s = 0.1
    gc_w, gc_b = [], []
    in_dims = [F_IN + D * PRE_V] + [D] * (E_LAYER - 1)
    for i, c in enumerate(in_dims):
        # kernel layout (NUM_METRICS, C, D); equivalent PyTorch Linear weight is
        # (D, C*NUM_METRICS) with in-feature index c_idx*NUM_METRICS + m.
        gc_w.append(s * jax.random.normal(keys[7 + 2 * i],
                                          (NUM_METRICS, c, D), jnp.float32))
        gc_b.append(s * jax.random.normal(keys[8 + 2 * i], (1, D), jnp.float32))
    return {
        # nn.Parameter(torch.zeros(...)) in __init__; initialized deterministically
        # non-zero here for a non-degenerate synthetic test.
        "W": s * jax.random.normal(keys[0], (D, D), jnp.float32),
        "b": s * jax.random.normal(keys[1], (N, D), jnp.float32),
        "R": s * jax.random.normal(keys[2], (PRE_K, N, D), jnp.float32),
        # attlinear (Linear(N*D, 1)): weight stored node-major as (N, D)
        "att_w": s * jax.random.normal(keys[3], (N, D), jnp.float32),
        "att_b": s * jax.random.normal(keys[4], (1, 1), jnp.float32),
        "evo_att_w": s * jax.random.normal(keys[5], (N, D), jnp.float32),
        "evo_att_b": s * jax.random.normal(keys[6], (1, 1), jnp.float32),
        "gc_w": gc_w,
        "gc_b": gc_b,
    }


# ----------------------------- forward (thin jitted wrapper) ----------------
@jax.jit
def msdr_cell_forward(inputs, supports, hidden_states, params):
    bs, k, n, d = hidden_states.shape
    # preH = cat([h[:, -1], h[:, -2], ...], -1); x = cat([inputs, preH], -1)
    parts = [hidden_states[:, k - 1 - i] for i in range(PRE_V)]
    x_rows = jnp.concatenate([inputs] + parts, axis=-1).reshape(bs * n, -1)
    # block-diagonal supports: one batch-wide Chebyshev matmul per metric.
    eye_b = jnp.eye(bs, dtype=jnp.float32)
    sblk = jnp.stack([jnp.kron(eye_b, supports[i]) for i in range(E_LAYER)])

    out_rows = _fused_call(x_rows, hidden_states, sblk, params)      # (B*N, D)
    output = out_rows.reshape(bs, n, d)

    # Hidden-history roll.  (For a time-step scan this should be done in-kernel
    # with input_output_aliases; a single call makes this concat equivalent.)
    new_hidden = jnp.concatenate([hidden_states[:, 1:], output[:, None]], axis=1)
    return output, new_hidden


# ----------------------------- pure-JAX reference ---------------------------
def _graphconv_ref(x, S, w_kernel, bias):
    # mirrors GraphConv_.forward exactly (permute/reshape/concat ordering)
    b, n, c = x.shape
    M = w_kernel.shape[0]
    x0 = jnp.transpose(x, (1, 2, 0)).reshape(n, c * b)
    mats = [x0]
    if M >= 2:
        x1 = S @ x0
        mats.append(x1)
        xm2, xm1 = x0, x1
        for _ in range(2, M):
            x2 = 2.0 * (S @ xm1) - xm2
            mats.append(x2)
            xm2, xm1 = xm1, x2
    xs = jnp.stack(mats, axis=0).reshape(M, n, c, b)
    xs = jnp.transpose(xs, (3, 1, 2, 0)).reshape(b, n, c * M)
    w_pt = jnp.transpose(w_kernel, (1, 0, 2)).reshape(c * M, -1)  # (c*M, D)
    return xs @ w_pt + bias.reshape(-1)


def _attention_ref(x4, w, bscalar):
    b, g, n, f = x4.shape
    xf = x4.reshape(b, g, n * f)
    logits = xf @ w.reshape(n * f, 1) + bscalar.reshape(())       # (B, G, 1)
    weight = jax.nn.softmax(logits, axis=1)
    return (xf * weight).sum(axis=1).reshape(b, n, f)


def msdr_cell_ref(inputs, supports, hidden_states, params):
    bs, k, n, d = hidden_states.shape
    parts = [hidden_states[:, k - 1 - i] for i in range(PRE_V)]
    preH = jnp.concatenate(parts, axis=-1)
    x = jnp.concatenate([inputs, preH], axis=-1)
    cur = x
    outs = []
    for i in range(E_LAYER):
        cur = _graphconv_ref(cur, supports[i], params["gc_w"][i], params["gc_b"][i])
        outs.append(cur)
    stacked = jnp.stack(outs, axis=1)
    evo_out = _attention_ref(stacked, params["evo_att_w"], params["evo_att_b"])
    conv_in = jnp.where(evo_out >= 0, evo_out, LEAKY_SLOPE * evo_out)
    new_states = hidden_states + params["R"][None]
    att = _attention_ref(new_states, params["att_w"], params["att_b"])
    output = conv_in @ params["W"] + params["b"][None] + att
    new_hidden = jnp.concatenate([hidden_states[:, 1:], output[:, None]], axis=1)
    return output, new_hidden


# ----------------------------- main ------------------------------------------
if __name__ == "__main__":
    key = jax.random.PRNGKey(0)
    k_in, k_hid, k_sup, k_par = jax.random.split(key, 4)
    inputs = jax.random.normal(k_in, (B, N, F_IN), jnp.float32)
    hidden_states = jax.random.normal(k_hid, (B, PRE_K, N, D), jnp.float32)
    supports = jax.random.normal(k_sup, (E_LAYER, N, N), jnp.float32) / jnp.sqrt(N)
    params = init_params(k_par)

    out, new_h = msdr_cell_forward(inputs, supports, hidden_states, params)
    out = jax.block_until_ready(out)
    new_h = jax.block_until_ready(new_h)

    out_ref, new_h_ref = msdr_cell_ref(inputs, supports, hidden_states, params)
    assert out.shape == (B, N, D) and new_h.shape == (B, PRE_K, N, D)
    assert jnp.allclose(out, out_ref, atol=1e-4, rtol=1e-4)
    assert jnp.allclose(new_h, new_h_ref, atol=1e-4, rtol=1e-4)
    print("KERNEL_OK")
</pallas_src>

<mosaic_0001>
module attributes {stable_mosaic.version = 11 : i64} {
  func.func @msdr_fused_kernel(%arg0: memref<32x68xf32, #tpu.memory_space<vmem>>, %arg1: memref<2x3x16x32xf32, #tpu.memory_space<vmem>>, %arg2: memref<2x32x32xf32, #tpu.memory_space<vmem>>, %arg3: memref<3x68x32xf32, #tpu.memory_space<vmem>>, %arg4: memref<1x32xf32, #tpu.memory_space<vmem>>, %arg5: memref<3x32x32xf32, #tpu.memory_space<vmem>>, %arg6: memref<1x32xf32, #tpu.memory_space<vmem>>, %arg7: memref<16x32xf32, #tpu.memory_space<vmem>>, %arg8: memref<16x32xf32, #tpu.memory_space<vmem>>, %arg9: memref<3x16x32xf32, #tpu.memory_space<vmem>>, %arg10: memref<32x32xf32, #tpu.memory_space<vmem>>, %arg11: memref<16x32xf32, #tpu.memory_space<vmem>>, %arg12: memref<1x1xf32, #tpu.memory_space<smem>>, %arg13: memref<1x1xf32, #tpu.memory_space<smem>>, %arg14: memref<32x32xf32, #tpu.memory_space<vmem>>) attributes {dimension_semantics = [], scalar_prefetch = 0 : i64, scratch_operands = 0 : i64, tpu.core_type = #tpu.core_type<tc>} {
    %c0 = arith.constant 0 : index
    %c0_0 = arith.constant 0 : index
    %0 = vector.load %arg0[%c0, %c0_0] : memref<32x68xf32, #tpu.memory_space<vmem>>, vector<32x68xf32>
    %c0_1 = arith.constant 0 : index
    %c0_2 = arith.constant 0 : index
    %c0_3 = arith.constant 0 : index
    %1 = vector.load %arg2[%c0_1, %c0_2, %c0_3] : memref<2x32x32xf32, #tpu.memory_space<vmem>>, vector<1x32x32xf32>
    %2 = vector.shape_cast %1 : vector<1x32x32xf32> to vector<32x32xf32>
    %c0_4 = arith.constant 0 : index
    %c0_5 = arith.constant 0 : index
    %c0_6 = arith.constant 0 : index
    %3 = vector.load %arg3[%c0_4, %c0_5, %c0_6] : memref<3x68x32xf32, #tpu.memory_space<vmem>>, vector<1x68x32xf32>
    %4 = vector.shape_cast %3 : vector<1x68x32xf32> to vector<68x32xf32>
    %cst = arith.constant dense<0.000000e+00> : vector<32x32xf32>
    %5 = tpu.matmul %0, %4, %cst {dimension_numbers = #tpu.dot_dimension_numbers<[1], [0], [0], [1], [0, 0, 1, 1], [], []>} : vector<32x68xf32>, vector<68x32xf32>, vector<32x32xf32> -> vector<32x32xf32>
    %cst_7 = arith.constant dense<0.000000e+00> : vector<32x68xf32>
    %6 = tpu.matmul %2, %0, %cst_7 {dimension_numbers = #tpu.dot_dimension_numbers<[1], [0], [0], [1], [0, 0, 1, 1], [], []>} : vector<32x32xf32>, vector<32x68xf32>, vector<32x68xf32> -> vector<32x68xf32>
    %c1 = arith.constant 1 : index
    %c0_8 = arith.constant 0 : index
    %c0_9 = arith.constant 0 : index
    %7 = vector.load %arg3[%c1, %c0_8, %c0_9] : memref<3x68x32xf32, #tpu.memory_space<vmem>>, vector<1x68x32xf32>
    %8 = vector.shape_cast %7 : vector<1x68x32xf32> to vector<68x32xf32>
    %cst_10 = arith.constant dense<0.000000e+00> : vector<32x32xf32>
    %9 = tpu.matmul %6, %8, %cst_10 {dimension_numbers = #tpu.dot_dimension_numbers<[1], [0], [0], [1], [0, 0, 1, 1], [], []>} : vector<32x68xf32>, vector<68x32xf32>, vector<32x32xf32> -> vector<32x32xf32>
    %10 = arith.addf %5, %9 : vector<32x32xf32>
    %cst_11 = arith.constant dense<0.000000e+00> : vector<32x68xf32>
    %11 = tpu.matmul %2, %6, %cst_11 {dimension_numbers = #tpu.dot_dimension_numbers<[1], [0], [0], [1], [0, 0, 1, 1], [], []>} : vector<32x32xf32>, vector<32x68xf32>, vector<32x68xf32> -> vector<32x68xf32>
    %cst_12 = arith.constant 2.000000e+00 : f32
    %12 = vector.broadcast %cst_12 : f32 to vector<32x68xf32>
    %13 = arith.mulf %12, %11 : vector<32x68xf32>
    %14 = arith.subf %13, %0 : vector<32x68xf32>
    %c2 = arith.constant 2 : index
    %c0_13 = arith.constant 0 : index
    %c0_14 = arith.constant 0 : index
    %15 = vector.load %arg3[%c2, %c0_13, %c0_14] : memref<3x68x32xf32, #tpu.memory_space<vmem>>, vector<1x68x32xf32>
    %16 = vector.shape_cast %15 : vector<1x68x32xf32> to vector<68x32xf32>
    %cst_15 = arith.constant dense<0.000000e+00> : vector<32x32xf32>
    %17 = tpu.matmul %14, %16, %cst_15 {dimension_numbers = #tpu.dot_dimension_numbers<[1], [0], [0], [1], [0, 0, 1, 1], [], []>} : vector<32x68xf32>, vector<68x32xf32>, vector<32x32xf32> -> vector<32x32xf32>
    %18 = arith.addf %10, %17 : vector<32x32xf32>
    %c0_16 = arith.constant 0 : index
    %c0_17 = arith.constant 0 : index
    %19 = vector.load %arg4[%c0_16, %c0_17] : memref<1x32xf32, #tpu.memory_space<vmem>>, vector<1x32xf32>
    %20 = vector.broadcast %19 : vector<1x32xf32> to vector<32x32xf32>
    %21 = arith.addf %18, %20 : vector<32x32xf32>
    %c1_18 = arith.constant 1 : index
    %c0_19 = arith.constant 0 : index
    %c0_20 = arith.constant 0 : index
    %22 = vector.load %arg2[%c1_18, %c0_19, %c0_20] : memref<2x32x32xf32, #tpu.memory_space<vmem>>, vector<1x32x32xf32>
    %23 = vector.shape_cast %22 : vector<1x32x32xf32> to vector<32x32xf32>
    %c0_21 = arith.constant 0 : index
    %c0_22 = arith.constant 0 : index
    %c0_23 = arith.constant 0 : index
    %24 = vector.load %arg5[%c0_21, %c0_22, %c0_23] : memref<3x32x32xf32, #tpu.memory_space<vmem>>, vector<1x32x32xf32>
    %25 = vector.shape_cast %24 : vector<1x32x32xf32> to vector<32x32xf32>
    %cst_24 = arith.constant dense<0.000000e+00> : vector<32x32xf32>
    %26 = tpu.matmul %21, %25, %cst_24 {dimension_numbers = #tpu.dot_dimension_numbers<[1], [0], [0], [1], [0, 0, 1, 1], [], []>} : vector<32x32xf32>, vector<32x32xf32>, vector<32x32xf32> -> vector<32x32xf32>
    %cst_25 = arith.constant dense<0.000000e+00> : vector<32x32xf32>
    %27 = tpu.matmul %23, %21, %cst_25 {dimension_numbers = #tpu.dot_dimension_numbers<[1], [0], [0], [1], [0, 0, 1, 1], [], []>} : vector<32x32xf32>, vector<32x32xf32>, vector<32x32xf32> -> vector<32x32xf32>
    %c1_26 = arith.constant 1 : index
    %c0_27 = arith.constant 0 : index
    %c0_28 = arith.constant 0 : index
    %28 = vector.load %arg5[%c1_26, %c0_27, %c0_28] : memref<3x32x32xf32, #tpu.memory_space<vmem>>, vector<1x32x32xf32>
    %29 = vector.shape_cast %28 : vector<1x32x32xf32> to vector<32x32xf32>
    %cst_29 = arith.constant dense<0.000000e+00> : vector<32x32xf32>
    %30 = tpu.matmul %27, %29, %cst_29 {dimension_numbers = #tpu.dot_dimension_numbers<[1], [0], [0], [1], [0, 0, 1, 1], [], []>} : vector<32x32xf32>, vector<32x32xf32>, vector<32x32xf32> -> vector<32x32xf32>
    %31 = arith.addf %26, %30 : vector<32x32xf32>
    %cst_30 = arith.constant dense<0.000000e+00> : vector<32x32xf32>
    %32 = tpu.matmul %23, %27, %cst_30 {dimension_numbers = #tpu.dot_dimension_numbers<[1], [0], [0], [1], [0, 0, 1, 1], [], []>} : vector<32x32xf32>, vector<32x32xf32>, vector<32x32xf32> -> vector<32x32xf32>
    %cst_31 = arith.constant 2.000000e+00 : f32
    %33 = vector.broadcast %cst_31 : f32 to vector<32x32xf32>
    %34 = arith.mulf %33, %32 : vector<32x32xf32>
    %35 = arith.subf %34, %21 : vector<32x32xf32>
    %c2_32 = arith.constant 2 : index
    %c0_33 = arith.constant 0 : index
    %c0_34 = arith.constant 0 : index
    %36 = vector.load %arg5[%c2_32, %c0_33, %c0_34] : memref<3x32x32xf32, #tpu.memory_space<vmem>>, vector<1x32x32xf32>
    %37 = vector.shape_cast %36 : vector<1x32x32xf32> to vector<32x32xf32>
    %cst_35 = arith.constant dense<0.000000e+00> : vector<32x32xf32>
    %38 = tpu.matmul %35, %37, %cst_35 {dimension_numbers = #tpu.dot_dimension_numbers<[1], [0], [0], [1], [0, 0, 1, 1], [], []>} : vector<32x32xf32>, vector<32x32xf32>, vector<32x32xf32> -> vector<32x32xf32>
    %39 = arith.addf %31, %38 : vector<32x32xf32>
    %c0_36 = arith.constant 0 : index
    %c0_37 = arith.constant 0 : index
    %40 = vector.load %arg6[%c0_36, %c0_37] : memref<1x32xf32, #tpu.memory_space<vmem>>, vector<1x32xf32>
    %41 = vector.broadcast %40 : vector<1x32xf32> to vector<32x32xf32>
    %42 = arith.addf %39, %41 : vector<32x32xf32>
    %43 = vector.shape_cast %21 : vector<32x32xf32> to vector<2x16x32xf32>
    %44 = vector.shape_cast %42 : vector<32x32xf32> to vector<2x16x32xf32>
    %c0_38 = arith.constant 0 : index
    %c0_39 = arith.constant 0 : index
    %45 = vector.load %arg7[%c0_38, %c0_39] : memref<16x32xf32, #tpu.memory_space<vmem>>, vector<16x32xf32>
    %c0_40 = arith.constant 0 : index
    %c0_41 = arith.constant 0 : index
    %46 = memref.load %arg12[%c0_40, %c0_41] : memref<1x1xf32, #tpu.memory_space<smem>>
    %47 = vector.shape_cast %45 : vector<16x32xf32> to vector<1x16x32xf32>
    %48 = vector.broadcast %47 : vector<1x16x32xf32> to vector<2x16x32xf32>
    %49 = arith.mulf %43, %48 : vector<2x16x32xf32>
    %cst_42 = arith.constant dense<0.000000e+00> : vector<2x16xf32>
    %50 = vector.multi_reduction <add>, %49, %cst_42 [2] : vector<2x16x32xf32> to vector<2x16xf32>
    %cst_43 = arith.constant dense<0.000000e+00> : vector<2xf32>
    %51 = vector.multi_reduction <add>, %50, %cst_43 [1] : vector<2x16xf32> to vector<2xf32>
    %52 = vector.shape_cast %51 : vector<2xf32> to vector<2x1xf32>
    %53 = vector.broadcast %46 : f32 to vector<2x1xf32>
    %54 = arith.addf %52, %53 : vector<2x1xf32>
    %55 = vector.shape_cast %45 : vector<16x32xf32> to vector<1x16x32xf32>
    %56 = vector.broadcast %55 : vector<1x16x32xf32> to vector<2x16x32xf32>
    %57 = arith.mulf %44, %56 : vector<2x16x32xf32>
    %cst_44 = arith.constant dense<0.000000e+00> : vector<2x16xf32>
    %58 = vector.multi_reduction <add>, %57, %cst_44 [2] : vector<2x16x32xf32> to vector<2x16xf32>
    %cst_45 = arith.constant dense<0.000000e+00> : vector<2xf32>
    %59 = vector.multi_reduction <add>, %58, %cst_45 [1] : vector<2x16xf32> to vector<2xf32>
    %60 = vector.shape_cast %59 : vector<2xf32> to vector<2x1xf32>
    %61 = vector.broadcast %46 : f32 to vector<2x1xf32>
    %62 = arith.addf %60, %61 : vector<2x1xf32>
    %63 = arith.maximumf %54, %62 : vector<2x1xf32>
    %64 = arith.subf %54, %63 : vector<2x1xf32>
    %65 = math.exp %64 : vector<2x1xf32>
    %66 = arith.subf %62, %63 : vector<2x1xf32>
    %67 = math.exp %66 : vector<2x1xf32>
    %68 = arith.addf %65, %67 : vector<2x1xf32>
    %69 = arith.divf %65, %68 : vector<2x1xf32>
    %70 = vector.shape_cast %69 : vector<2x1xf32> to vector<2x1x1xf32>
    %71 = vector.broadcast %70 : vector<2x1x1xf32> to vector<2x16x32xf32>
    %72 = arith.mulf %71, %43 : vector<2x16x32xf32>
    %73 = arith.divf %67, %68 : vector<2x1xf32>
    %74 = vector.shape_cast %73 : vector<2x1xf32> to vector<2x1x1xf32>
    %75 = vector.broadcast %74 : vector<2x1x1xf32> to vector<2x16x32xf32>
    %76 = arith.mulf %75, %44 : vector<2x16x32xf32>
    %77 = arith.addf %72, %76 : vector<2x16x32xf32>
    %c0_46 = arith.constant 0 : index
    %c0_47 = arith.constant 0 : index
    %c0_48 = arith.constant 0 : index
    %c0_49 = arith.constant 0 : index
    %78 = vector.load %arg1[%c0_46, %c0_47, %c0_48, %c0_49] : memref<2x3x16x32xf32, #tpu.memory_space<vmem>>, vector<2x3x16x32xf32>
    %79 = vector.extract_strided_slice %78 {offsets = [0, 0, 0, 0], sizes = [2, 1, 16, 32], strides = [1, 1, 1, 1]} : vector<2x3x16x32xf32> to vector<2x1x16x32xf32>
    %80 = vector.shape_cast %79 : vector<2x1x16x32xf32> to vector<2x16x32xf32>
    %c0_50 = arith.constant 0 : index
    %c0_51 = arith.constant 0 : index
    %c0_52 = arith.constant 0 : index
    %81 = vector.load %arg9[%c0_50, %c0_51, %c0_52] : memref<3x16x32xf32, #tpu.memory_space<vmem>>, vector<1x16x32xf32>
    %82 = vector.shape_cast %81 : vector<1x16x32xf32> to vector<16x32xf32>
    %83 = vector.shape_cast %82 : vector<16x32xf32> to vector<1x16x32xf32>
    %84 = vector.broadcast %83 : vector<1x16x32xf32> to vector<2x16x32xf32>
    %85 = arith.addf %80, %84 : vector<2x16x32xf32>
    %86 = vector.extract_strided_slice %78 {offsets = [0, 1, 0, 0], sizes = [2, 1, 16, 32], strides = [1, 1, 1, 1]} : vector<2x3x16x32xf32> to vector<2x1x16x32xf32>
    %87 = vector.shape_cast %86 : vector<2x1x16x32xf32> to vector<2x16x32xf32>
    %c1_53 = arith.constant 1 : index
    %c0_54 = arith.constant 0 : index
    %c0_55 = arith.constant 0 : index
    %88 = vector.load %arg9[%c1_53, %c0_54, %c0_55] : memref<3x16x32xf32, #tpu.memory_space<vmem>>, vector<1x16x32xf32>
    %89 = vector.shape_cast %88 : vector<1x16x32xf32> to vector<16x32xf32>
    %90 = vector.shape_cast %89 : vector<16x32xf32> to vector<1x16x32xf32>
    %91 = vector.broadcast %90 : vector<1x16x32xf32> to vector<2x16x32xf32>
    %92 = arith.addf %87, %91 : vector<2x16x32xf32>
    %93 = vector.extract_strided_slice %78 {offsets = [0, 2, 0, 0], sizes = [2, 1, 16, 32], strides = [1, 1, 1, 1]} : vector<2x3x16x32xf32> to vector<2x1x16x32xf32>
    %94 = vector.shape_cast %93 : vector<2x1x16x32xf32> to vector<2x16x32xf32>
    %c2_56 = arith.constant 2 : index
    %c0_57 = arith.constant 0 : index
    %c0_58 = arith.constant 0 : index
    %95 = vector.load %arg9[%c2_56, %c0_57, %c0_58] : memref<3x16x32xf32, #tpu.memory_space<vmem>>, vector<1x16x32xf32>
    %96 = vector.shape_cast %95 : vector<1x16x32xf32> to vector<16x32xf32>
    %97 = vector.shape_cast %96 : vector<16x32xf32> to vector<1x16x32xf32>
    %98 = vector.broadcast %97 : vector<1x16x32xf32> to vector<2x16x32xf32>
    %99 = arith.addf %94, %98 : vector<2x16x32xf32>
    %c0_59 = arith.constant 0 : index
    %c0_60 = arith.constant 0 : index
    %100 = vector.load %arg8[%c0_59, %c0_60] : memref<16x32xf32, #tpu.memory_space<vmem>>, vector<16x32xf32>
    %c0_61 = arith.constant 0 : index
    %c0_62 = arith.constant 0 : index
    %101 = memref.load %arg13[%c0_61, %c0_62] : memref<1x1xf32, #tpu.memory_space<smem>>
    %102 = vector.shape_cast %100 : vector<16x32xf32> to vector<1x16x32xf32>
    %103 = vector.broadcast %102 : vector<1x16x32xf32> to vector<2x16x32xf32>
    %104 = arith.mulf %85, %103 : vector<2x16x32xf32>
    %cst_63 = arith.constant dense<0.000000e+00> : vector<2x16xf32>
    %105 = vector.multi_reduction <add>, %104, %cst_63 [2] : vector<2x16x32xf32> to vector<2x16xf32>
    %cst_64 = arith.constant dense<0.000000e+00> : vector<2xf32>
    %106 = vector.multi_reduction <add>, %105, %cst_64 [1] : vector<2x16xf32> to vector<2xf32>
    %107 = vector.shape_cast %106 : vector<2xf32> to vector<2x1xf32>
    %108 = vector.broadcast %101 : f32 to vector<2x1xf32>
    %109 = arith.addf %107, %108 : vector<2x1xf32>
    %110 = vector.shape_cast %100 : vector<16x32xf32> to vector<1x16x32xf32>
    %111 = vector.broadcast %110 : vector<1x16x32xf32> to vector<2x16x32xf32>
    %112 = arith.mulf %92, %111 : vector<2x16x32xf32>
    %cst_65 = arith.constant dense<0.000000e+00> : vector<2x16xf32>
    %113 = vector.multi_reduction <add>, %112, %cst_65 [2] : vector<2x16x32xf32> to vector<2x16xf32>
    %cst_66 = arith.constant dense<0.000000e+00> : vector<2xf32>
    %114 = vector.multi_reduction <add>, %113, %cst_66 [1] : vector<2x16xf32> to vector<2xf32>
    %115 = vector.shape_cast %114 : vector<2xf32> to vector<2x1xf32>
    %116 = vector.broadcast %101 : f32 to vector<2x1xf32>
    %117 = arith.addf %115, %116 : vector<2x1xf32>
    %118 = vector.shape_cast %100 : vector<16x32xf32> to vector<1x16x32xf32>
    %119 = vector.broadcast %118 : vector<1x16x32xf32> to vector<2x16x32xf32>
    %120 = arith.mulf %99, %119 : vector<2x16x32xf32>
    %cst_67 = arith.constant dense<0.000000e+00> : vector<2x16xf32>
    %121 = vector.multi_reduction <add>, %120, %cst_67 [2] : vector<2x16x32xf32> to vector<2x16xf32>
    %cst_68 = arith.constant dense<0.000000e+00> : vector<2xf32>
    %122 = vector.multi_reduction <add>, %121, %cst_68 [1] : vector<2x16xf32> to vector<2xf32>
    %123 = vector.shape_cast %122 : vector<2xf32> to vector<2x1xf32>
    %124 = vector.broadcast %101 : f32 to vector<2x1xf32>
    %125 = arith.addf %123, %124 : vector<2x1xf32>
    %126 = arith.maximumf %109, %117 : vector<2x1xf32>
    %127 = arith.maximumf %126, %125 : vector<2x1xf32>
    %128 = arith.subf %109, %127 : vector<2x1xf32>
    %129 = math.exp %128 : vector<2x1xf32>
    %130 = arith.subf %117, %127 : vector<2x1xf32>
    %131 = math.exp %130 : vector<2x1xf32>
    %132 = arith.subf %125, %127 : vector<2x1xf32>
    %133 = math.exp %132 : vector<2x1xf32>
    %134 = arith.addf %129, %131 : vector<2x1xf32>
    %135 = arith.addf %134, %133 : vector<2x1xf32>
    %136 = arith.divf %129, %135 : vector<2x1xf32>
    %137 = vector.shape_cast %136 : vector<2x1xf32> to vector<2x1x1xf32>
    %138 = vector.broadcast %137 : vector<2x1x1xf32> to vector<2x16x32xf32>
    %139 = arith.mulf %138, %85 : vector<2x16x32xf32>
    %140 = arith.divf %131, %135 : vector<2x1xf32>
    %141 = vector.shape_cast %140 : vector<2x1xf32> to vector<2x1x1xf32>
    %142 = vector.broadcast %141 : vector<2x1x1xf32> to vector<2x16x32xf32>
    %143 = arith.mulf %142, %92 : vector<2x16x32xf32>
    %144 = arith.addf %139, %143 : vector<2x16x32xf32>
    %145 = arith.divf %133, %135 : vector<2x1xf32>
    %146 = vector.shape_cast %145 : vector<2x1xf32> to vector<2x1x1xf32>
    %147 = vector.broadcast %146 : vector<2x1x1xf32> to vector<2x16x32xf32>
    %148 = arith.mulf %147, %99 : vector<2x16x32xf32>
    %149 = arith.addf %144, %148 : vector<2x16x32xf32>
    %150 = vector.shape_cast %77 : vector<2x16x32xf32> to vector<32x32xf32>
    %cst_69 = arith.constant 0.000000e+00 : f32
    %151 = vector.broadcast %cst_69 : f32 to vector<32x32xf32>
    %152 = arith.cmpf oge, %150, %151 : vector<32x32xf32>
    %cst_70 = arith.constant 0.00999999977 : f32
    %153 = vector.broadcast %cst_70 : f32 to vector<32x32xf32>
    %154 = arith.mulf %153, %150 : vector<32x32xf32>
    %155 = arith.select %152, %150, %154 : vector<32x32xi1>, vector<32x32xf32>
    %c0_71 = arith.constant 0 : index
    %c0_72 = arith.constant 0 : index
    %156 = vector.load %arg10[%c0_71, %c0_72] : memref<32x32xf32, #tpu.memory_space<vmem>>, vector<32x32xf32>
    %cst_73 = arith.constant dense<0.000000e+00> : vector<32x32xf32>
    %157 = tpu.matmul %155, %156, %cst_73 {dimension_numbers = #tpu.dot_dimension_numbers<[1], [0], [0], [1], [0, 0, 1, 1], [], []>} : vector<32x32xf32>, vector<32x32xf32>, vector<32x32xf32> -> vector<32x32xf32>
    %158 = vector.shape_cast %157 : vector<32x32xf32> to vector<2x16x32xf32>
    %c0_74 = arith.constant 0 : index
    %c0_75 = arith.constant 0 : index
    %159 = vector.load %arg11[%c0_74, %c0_75] : memref<16x32xf32, #tpu.memory_space<vmem>>, vector<16x32xf32>
    %160 = vector.shape_cast %159 : vector<16x32xf32> to vector<1x16x32xf32>
    %161 = vector.broadcast %160 : vector<1x16x32xf32> to vector<2x16x32xf32>
    %162 = arith.addf %158, %161 : vector<2x16x32xf32>
    %163 = arith.addf %162, %149 : vector<2x16x32xf32>
    %164 = vector.shape_cast %163 : vector<2x16x32xf32> to vector<32x32xf32>
    %c0_76 = arith.constant 0 : index
    %c0_77 = arith.constant 0 : index
    %165 = vector.load %arg14[%c0_76, %c0_77] : memref<32x32xf32, #tpu.memory_space<vmem>>, vector<32x32xf32>
    tpu.vector_store %arg14[%c0_76, %c0_77], %164 {strides = array<i32>} : memref<32x32xf32, #tpu.memory_space<vmem>>, vector<32x32xf32>,
    return
  }
}

</mosaic_0001>

<llo_original>
// kernel: msdr_cell_forward.1
$region0: #{msdr_cell_forward.1}
  #allocation0 [shape = 'u32[]', space=smem, size = 0x4, offset = 0x4, fixed_abs, tag = 'smem constant byte address 0x4 - core index']
  #allocation1 [shape = 'u32[144,128]{1,0:T(1,128)}', space=vmem, size = 0x12000, scoped, tag = 'internal scratch']
  #allocation2 [shape = 'f32[1,1]{1,0:T(1,128)S(6)}', space=smem, size = 0x200, scoped, tag = 'scoped memory for msdr_cell_forward.1']
  #allocation3 [shape = 'f32[1,1]{1,0:T(1,128)S(6)}', space=smem, size = 0x200, scoped, tag = 'scoped memory for msdr_cell_forward.1']
  %s0 = inlined_call_operand.vmem [shape: f32[32,68], index: 0, kind: input, shape index: {}]
  %s1 = inlined_call_operand.vmem [shape: f32[2,3,16,32], index: 1, kind: input, shape index: {}]
  %s2 = inlined_call_operand.vmem [shape: f32[2,32,32], index: 2, kind: input, shape index: {}]
  %s3 = inlined_call_operand.vmem [shape: f32[3,68,32], index: 3, kind: input, shape index: {}]
  %s4 = inlined_call_operand.vmem [shape: f32[1,32], index: 4, kind: input, shape index: {}]
  %s5 = inlined_call_operand.vmem [shape: f32[3,32,32], index: 5, kind: input, shape index: {}]
  %s6 = inlined_call_operand.vmem [shape: f32[1,32], index: 6, kind: input, shape index: {}]
  %s7 = inlined_call_operand.vmem [shape: f32[16,32], index: 7, kind: input, shape index: {}]
  %s8 = inlined_call_operand.vmem [shape: f32[16,32], index: 8, kind: input, shape index: {}]
  %s9 = inlined_call_operand.vmem [shape: f32[3,16,32], index: 9, kind: input, shape index: {}]
  %s10 = inlined_call_operand.vmem [shape: f32[32,32], index: 10, kind: input, shape index: {}]
  %s11 = inlined_call_operand.vmem [shape: f32[16,32], index: 11, kind: input, shape index: {}]
  %s12 = inlined_call_operand.<no memory space> [shape: f32[1,1], index: 12, kind: input, shape index: {}]
  %s13 = inlined_call_operand.<no memory space> [shape: f32[1,1], index: 13, kind: input, shape index: {}]
  %s14 = inlined_call_operand.vmem [shape: f32[32,32], index: 14, kind: output, shape index: {}]
  %s15 = sld [smem:[#allocation0]]
  $region66: #{msdr_cell_forward.1} parent=0
    _
  %s17 = ssub.s32 1, %s15
  %s18 = scalar_select 0, %s17, %s15
  %19 = sst [smem:[#allocation2]] %s12
  %20 = sst [smem:[#allocation3]] %s13
  // Predicated region
  $region2: #{msdr_cell_forward.1} parent=0 // pred_check
    _
  $region3: #{msdr_cell_forward.1} parent=0 // pred_check_branch
    %22 = sbr.rel (0) target = $region5
  $region4: #{msdr_cell_forward.1} parent=0 // pred_region
    _
  $region5: #{msdr_cell_forward.1} parent=0 // pred_fallthru
    _
  // Predicated region
  $region6: #{msdr_cell_forward.1} parent=0 // pred_check
    _
  $region7: #{msdr_cell_forward.1} parent=0 // pred_check_branch
    %24 = sbr.rel (0) target = $region9
  $region8: #{msdr_cell_forward.1} parent=0 // pred_region
    _
  $region9: #{msdr_cell_forward.1} parent=0 // pred_fallthru
    _
  // Predicated region
  $region10: #{msdr_cell_forward.1} parent=0 // pred_check
    _
  $region11: #{msdr_cell_forward.1} parent=0 // pred_check_branch
    %26 = sbr.rel (0) target = $region13
  $region12: #{msdr_cell_forward.1} parent=0 // pred_region
    _
  $region13: #{msdr_cell_forward.1} parent=0 // pred_fallthru
    _
  // Predicated region
  $region14: #{msdr_cell_forward.1} parent=0 // pred_check
    _
  $region15: #{msdr_cell_forward.1} parent=0 // pred_check_branch
    %28 = sbr.rel (0) target = $region17
  $region16: #{msdr_cell_forward.1} parent=0 // pred_region
    _
  $region17: #{msdr_cell_forward.1} parent=0 // pred_fallthru
    _
  // Predicated region
  $region18: #{msdr_cell_forward.1} parent=0 // pred_check
    _
  $region19: #{msdr_cell_forward.1} parent=0 // pred_check_branch
    %30 = sbr.rel (0) target = $region21
  $region20: #{msdr_cell_forward.1} parent=0 // pred_region
    _
  $region21: #{msdr_cell_forward.1} parent=0 // pred_fallthru
    _
  // Predicated region
  $region22: #{msdr_cell_forward.1} parent=0 // pred_check
    _
  $region23: #{msdr_cell_forward.1} parent=0 // pred_check_branch
    %32 = sbr.rel (0) target = $region25
  $region24: #{msdr_cell_forward.1} parent=0 // pred_region
    _
  $region25: #{msdr_cell_forward.1} parent=0 // pred_fallthru
    _
  // Predicated region
  $region26: #{msdr_cell_forward.1} parent=0 // pred_check
    _
  $region27: #{msdr_cell_forward.1} parent=0 // pred_check_branch
    %34 = sbr.rel (0) target = $region29
  $region28: #{msdr_cell_forward.1} parent=0 // pred_region
    _
  $region29: #{msdr_cell_forward.1} parent=0 // pred_fallthru
    _
  // Predicated region
  $region30: #{msdr_cell_forward.1} parent=0 // pred_check
    _
  $region31: #{msdr_cell_forward.1} parent=0 // pred_check_branch
    %36 = sbr.rel (0) target = $region33
  $region32: #{msdr_cell_forward.1} parent=0 // pred_region
    _
  $region33: #{msdr_cell_forward.1} parent=0 // pred_fallthru
    _
  // Predicated region
  $region34: #{msdr_cell_forward.1} parent=0 // pred_check
    _
  $region35: #{msdr_cell_forward.1} parent=0 // pred_check_branch
    %38 = sbr.rel (0) target = $region37
  $region36: #{msdr_cell_forward.1} parent=0 // pred_region
    _
  $region37: #{msdr_cell_forward.1} parent=0 // pred_fallthru
    _
  // Predicated region
  $region38: #{msdr_cell_forward.1} parent=0 // pred_check
    _
  $region39: #{msdr_cell_forward.1} parent=0 // pred_check_branch
    %40 = sbr.rel (0) target = $region41
  $region40: #{msdr_cell_forward.1} parent=0 // pred_region
    _
  $region41: #{msdr_cell_forward.1} parent=0 // pred_fallthru
    _
  // Predicated region
  $region42: #{msdr_cell_forward.1} parent=0 // pred_check
    _
  $region43: #{msdr_cell_forward.1} parent=0 // pred_check_branch
    %42 = sbr.rel (0) target = $region45
  $region44: #{msdr_cell_forward.1} parent=0 // pred_region
    _
  $region45: #{msdr_cell_forward.1} parent=0 // pred_fallthru
    _
  // Predicated region
  $region46: #{msdr_cell_forward.1} parent=0 // pred_check
    _
  $region47: #{msdr_cell_forward.1} parent=0 // pred_check_branch
    %44 = sbr.rel (0) target = $region49
  $region48: #{msdr_cell_forward.1} parent=0 // pred_region
    _
  $region49: #{msdr_cell_forward.1} parent=0 // pred_fallthru
    _
  // Predicated region
  $region50: #{msdr_cell_forward.1} parent=0 // pred_check
    _
  $region51: #{msdr_cell_forward.1} parent=0 // pred_check_branch
    %46 = sbr.rel (0) target = $region53
  $region52: #{msdr_cell_forward.1} parent=0 // pred_region
    _
  $region53: #{msdr_cell_forward.1} parent=0 // pred_fallthru
    _
  // Predicated region
  $region54: #{msdr_cell_forward.1} parent=0 // pred_check
    _
  $region55: #{msdr_cell_forward.1} parent=0 // pred_check_branch
    %48 = sbr.rel (0) target = $region57
  $region56: #{msdr_cell_forward.1} parent=0 // pred_region
    _
  $region57: #{msdr_cell_forward.1} parent=0 // pred_fallthru
    _
  %v49 = vld [vmem:[%s0] sm:$0xff]
  %v50 = vld [vmem:[%s0 + $0x8] sm:$0xff]
  %v51 = vld [vmem:[%s0 + $0x10] sm:$0xff]
  %v52 = vld [vmem:[%s0 + $0x18] sm:$0xff]
  %v53 = vld [vmem:[%s2] sm:$0xff]
  %v54 = vld [vmem:[%s2 + $0x8] sm:$0xff]
  %v55 = vld [vmem:[%s2 + $0x10] sm:$0xff]
  %v56 = vld [vmem:[%s2 + $0x18] sm:$0xff]
  %v57 = vld [vmem:[%s3] sm:$0xff]
  %v58 = vld [vmem:[%s3 + $0x8] sm:$0xff]
  %v59 = vld [vmem:[%s3 + $0x10] sm:$0xff]
  %v60 = vld [vmem:[%s3 + $0x18] sm:$0xff]
  %v61 = vld [vmem:[%s3 + $0x20] sm:$0xff]
  %v62 = vld [vmem:[%s3 + $0x28] sm:$0xff]
  %v63 = vld [vmem:[%s3 + $0x30] sm:$0xff]
  %v64 = vld [vmem:[%s3 + $0x38] sm:$0xff]
  %v65 = vld [vmem:[%s3 + $0x40] sm:$0xf]
  %vm66 = vcmask 261120
  %v68 = vsel %vm66, %v53, 0
  %v71 = vsel %vm66, %v54, 0
  %v74 = vsel %vm66, %v55, 0
  %v77 = vsel %vm66, %v56, 0
  %79 = vmatprep.subr.mxu0 0.0
  %80 = vmatpush1.msra.mxu0 %v49
  %81 = vmatprep.subr.mxu0 0.0
  %82 = vmatpush1.msra.mxu0 %v50
  %83 = vmatprep.subr.mxu0 0.0
  %84 = vmatpush1.msra.mxu0 %v51
  %85 = vmatprep.subr.mxu0 0.0
  %86 = vmatpush1.msra.mxu0 %v52
  %87 = vmatprep.subr.mxu0 0.0
  %88 = vmatpush1.msra.mxu0 0.0
  %89 = vmatprep.subr.mxu0 0.0
  %90 = vmatpush1.msra.mxu0 0.0
  %91 = vmatprep.subr.mxu0 0.0
  %92 = vmatpush1.msra.mxu0 0.0
  %93 = vmatprep.subr.mxu0 0.0
  %94 = vmatpush1.msra.mxu0 0.0
  %95 = vmatprep.subr.mxu0 0.0
  %96 = vmatpush1.msra.mxu0 0.0
  %97 = vmatprep.subr.mxu0 0.0
  %98 = vmatpush1.msra.mxu0 0.0
  %99 = vmatprep.subr.mxu0 0.0
  %100 = vmatpush1.msra.mxu0 0.0
  %101 = vmatprep.subr.mxu0 0.0
  %102 = vmatpush1.msra.mxu0 0.0
  %103 = vmatprep.subr.mxu0 0.0
  %104 = vmatpush1.msra.mxu0 0.0
  %105 = vmatprep.subr.mxu0 0.0
  %106 = vmatpush1.msra.mxu0 0.0
  %107 = vmatprep.subr.mxu0 0.0
  %108 = vmatpush1.msra.mxu0 0.0
  %109 = vmatprep.subr.mxu0 0.0
  %110 = vmatpush1.msra.mxu0 0.0
  %111 = vmatprep.subr.mxu0 0.0
  %112 = vmatpush1.msra.mxu0 0.0
  %113 = vmatprep.subr.mxu0 0.0
  %114 = vmatpush1.msra.mxu0 0.0
  %115 = vmatprep.subr.mxu0 0.0
  %116 = vmatpush1.msra.mxu0 0.0
  %117 = vmatprep.subr.mxu0 0.0
  %118 = vmatpush1.msra.mxu0 0.0
  %119 = vmatprep.subr.mxu0 0.0
  %120 = vmatpush1.msra.mxu0 0.0
  %121 = vmatprep.subr.mxu0 0.0
  %122 = vmatpush1.msra.mxu0 0.0
  %123 = vmatprep.subr.mxu0 0.0
  %124 = vmatpush1.msra.mxu0 0.0
  %125 = vmatprep.subr.mxu0 0.0
  %126 = vmatpush1.msra.mxu0 0.0
  %127 = vmatprep.subr.mxu0 0.0
  %128 = vmatpush1.msra.mxu0 0.0
  %129 = vmatprep.subr.mxu0 0.0
  %130 = vmatpush1.msra.mxu0 0.0
  %131 = vmatprep.subr.mxu0 0.0
  %132 = vmatpush1.msra.mxu0 0.0
  %133 = vmatprep.subr.mxu0 0.0
  %134 = vmatpush1.msra.mxu0 0.0
  %135 = vmatprep.subr.mxu0 0.0
  %136 = vmatpush1.msra.mxu0 0.0
  %137 = vmatprep.subr.mxu0 0.0
  %138 = vmatpush1.msra.mxu0 0.0
  %139 = vmatprep.subr.mxu0 0.0
  %140 = vmatpush1.msra.mxu0 0.0
  %141 = vmatprep.subr.mxu0 0.0
  %142 = vmatpush1.msra.mxu0 0.0
  %143 = vmatprep.mubr.f32.mxu0 0.0
  %144 = vmatmul.mubr.f32.gmra.mrb[0].mxu0 %v68
  %v145 = vpop.f32.mrb[0].mxu0
  %v146 = vadd.f32 0.0, %v145
  %v147 = vpop.f32.mrb[0].mxu0
  %148 = vmatprep.mubr.f32.mxu0 0.0
  %149 = vmatmul.mubr.f32.gmra.mrb[0].mxu0 %v71
  %v150 = vpop.f32.mrb[0].mxu0
  %v151 = vadd.f32 0.0, %v150
  %v152 = vpop.f32.mrb[0].mxu0
  %153 = vmatprep.mubr.f32.mxu0 0.0
  %154 = vmatmul.mubr.f32.gmra.mrb[0].mxu0 %v74
  %v155 = vpop.f32.mrb[0].mxu0
  %v156 = vadd.f32 0.0, %v155
  %v157 = vpop.f32.mrb[0].mxu0
  %158 = vmatprep.mubr.f32.mxu0 0.0
  %159 = vmatmul.mubr.f32.gmra.mrb[0].mxu0 %v77
  %v160 = vpop.f32.mrb[0].mxu0
  %v161 = vadd.f32 0.0, %v160
  %v162 = vpop.f32.mrb[0].mxu0
  %163 = vdwg.mxu0
  %s164 = scalar_lea.vmem %s3, 72
  %v165 = vld [vmem:[%s164] sm:$0xff]
  %v166 = vld [vmem:[%s164 + $0x8] sm:$0xff]
  %v167 = vld [vmem:[%s164 + $0x10] sm:$0xff]
  %v168 = vld [vmem:[%s164 + $0x18] sm:$0xff]
  %v169 = vld [vmem:[%s164 + $0x20] sm:$0xff]
  %v170 = vld [vmem:[%s164 + $0x28] sm:$0xff]
  %v171 = vld [vmem:[%s164 + $0x30] sm:$0xff]
  %v172 = vld [vmem:[%s164 + $0x38] sm:$0xff]
  %v173 = vld [vmem:[%s164 + $0x40] sm:$0xf]
  %vm174 = vcmask 556032
  %v176 = vsel %vm174, %v146, 0
  %v179 = vsel %vm174, %v151, 0
  %v182 = vsel %vm174, %v156, 0
  %v185 = vsel %vm174, %v161, 0
  %vm187 = vcmask 1043456
  %v189 = vsel %vm187, %v173, 0
  %191 = vmatprep.subr.mxu0 0.0
  %192 = vmatpush1.msra.mxu0 %v165
  %193 = vmatprep.subr.mxu0 0.0
  %194 = vmatpush1.msra.mxu0 %v166
  %195 = vmatprep.subr.mxu0 0.0
  %196 = vmatpush1.msra.mxu0 %v167
  %197 = vmatprep.subr.mxu0 0.0
  %198 = vmatpush1.msra.mxu0 %v168
  %199 = vmatprep.subr.mxu0 0.0
  %200 = vmatpush1.msra.mxu0 %v169
  %201 = vmatprep.subr.mxu0 0.0
  %202 = vmatpush1.msra.mxu0 %v170
  %203 = vmatprep.subr.mxu0 0.0
  %204 = vmatpush1.msra.mxu0 %v171
  %205 = vmatprep.subr.mxu0 0.0
  %206 = vmatpush1.msra.mxu0 %v172
  %207 = vmatprep.subr.mxu0 0.0
  %208 = vmatpush1.msra.mxu0 %v189
  %209 = vmatprep.subr.mxu0 0.0
  %210 = vmatpush1.msra.mxu0 0.0
  %211 = vmatprep.subr.mxu0 0.0
  %212 = vmatpush1.msra.mxu0 0.0
  %213 = vmatprep.subr.mxu0 0.0
  %214 = vmatpush1.msra.mxu0 0.0
  %215 = vmatprep.subr.mxu0 0.0
  %216 = vmatpush1.msra.mxu0 0.0
  %217 = vmatprep.subr.mxu0 0.0
  %218 = vmatpush1.msra.mxu0 0.0
  %219 = vmatprep.subr.mxu0 0.0
  %220 = vmatpush1.msra.mxu0 0.0
  %221 = vmatprep.subr.mxu0 0.0
  %222 = vmatpush1.msra.mxu0 0.0
  %223 = vmatprep.subr.mxu0 0.0
  %224 = vmatpush1.msra.mxu0 0.0
  %225 = vmatprep.subr.mxu0 0.0
  %226 = vmatpush1.msra.mxu0 0.0
  %227 = vmatprep.subr.mxu0 0.0
  %228 = vmatpush1.msra.mxu0 0.0
  %229 = vmatprep.subr.mxu0 0.0
  %230 = vmatpush1.msra.mxu0 0.0
  %231 = vmatprep.subr.mxu0 0.0
  %232 = vmatpush1.msra.mxu0 0.0
  %233 = vmatprep.subr.mxu0 0.0
  %234 = vmatpush1.msra.mxu0 0.0
  %235 = vmatprep.subr.mxu0 0.0
  %236 = vmatpush1.msra.mxu0 0.0
  %237 = vmatprep.subr.mxu0 0.0
  %238 = vmatpush1.msra.mxu0 0.0
  %239 = vmatprep.subr.mxu0 0.0
  %240 = vmatpush1.msra.mxu0 0.0
  %241 = vmatprep.subr.mxu0 0.0
  %242 = vmatpush1.msra.mxu0 0.0
  %243 = vmatprep.subr.mxu0 0.0
  %244 = vmatpush1.msra.mxu0 0.0
  %245 = vmatprep.subr.mxu0 0.0
  %246 = vmatpush1.msra.mxu0 0.0
  %247 = vmatprep.subr.mxu0 0.0
  %248 = vmatpush1.msra.mxu0 0.0
  %249 = vmatprep.subr.mxu0 0.0
  %250 = vmatpush1.msra.mxu0 0.0
  %251 = vmatprep.subr.mxu0 0.0
  %252 = vmatpush1.msra.mxu0 0.0
  %253 = vmatprep.subr.mxu0 0.0
  %254 = vmatpush1.msra.mxu0 0.0
  %255 = vmatprep.mubr.f32.mxu0 0.0
  %256 = vmatmul.mubr.f32.gmra.mrb[0].mxu0 %v176
  %v257 = vpop.f32.mrb[0].mxu0
  %v258 = vadd.f32 0.0, %v257
  %v259 = vpop.f32.mrb[0].mxu0
  %260 = vmatprep.mubr.f32.mxu0 0.0
  %261 = vmatmul.mubr.f32.gmra.mrb[0].mxu0 %v179
  %v262 = vpop.f32.mrb[0].mxu0
  %v263 = vadd.f32 0.0, %v262
  %v264 = vpop.f32.mrb[0].mxu0
  %265 = vmatprep.mubr.f32.mxu0 0.0
  %266 = vmatmul.mubr.f32.gmra.mrb[0].mxu0 %v182
  %v267 = vpop.f32.mrb[0].mxu0
  %v268 = vadd.f32 0.0, %v267
  %v269 = vpop.f32.mrb[0].mxu0
  %270 = vmatprep.mubr.f32.mxu0 0.0
  %271 = vmatmul.mubr.f32.gmra.mrb[0].mxu0 %v185
  %v272 = vpop.f32.mrb[0].mxu0
  %v273 = vadd.f32 0.0, %v272
  %v274 = vpop.f32.mrb[0].mxu0
  %275 = vdwg.mxu0
  %v277 = vsel %vm174, %v49, 0
  %v280 = vsel %vm174, %v50, 0
  %v283 = vsel %vm174, %v51, 0
  %v286 = vsel %vm174, %v52, 0
  %v289 = vsel %vm187, %v65, 0
  %291 = vmatprep.subr.mxu0 0.0
  %292 = vmatpush1.msra.mxu0 %v57
  %293 = vmatprep.subr.mxu0 0.0
  %294 = vmatpush1.msra.mxu0 %v58
  %295 = vmatprep.subr.mxu0 0.0
  %296 = vmatpush1.msra.mxu0 %v59
  %297 = vmatprep.subr.mxu0 0.0
  %298 = vmatpush1.msra.mxu0 %v60
  %299 = vmatprep.subr.mxu0 0.0
  %300 = vmatpush1.msra.mxu0 %v61
  %301 = vmatprep.subr.mxu0 0.0
  %302 = vmatpush1.msra.mxu0 %v62
  %303 = vmatprep.subr.mxu0 0.0
  %304 = vmatpush1.msra.mxu0 %v63
  %305 = vmatprep.subr.mxu0 0.0
  %306 = vmatpush1.msra.mxu0 %v64
  %307 = vmatprep.subr.mxu0 0.0
  %308 = vmatpush1.msra.mxu0 %v289
  %309 = vmatprep.subr.mxu0 0.0
  %310 = vmatpush1.msra.mxu0 0.0
  %311 = vmatprep.subr.mxu0 0.0
  %312 = vmatpush1.msra.mxu0 0.0
  %313 = vmatprep.subr.mxu0 0.0
  %314 = vmatpush1.msra.mxu0 0.0
  %315 = vmatprep.subr.mxu0 0.0
  %316 = vmatpush1.msra.mxu0 0.0
  %317 = vmatprep.subr.mxu0 0.0
  %318 = vmatpush1.msra.mxu0 0.0
  %319 = vmatprep.subr.mxu0 0.0
  %320 = vmatpush1.msra.mxu0 0.0
  %321 = vmatprep.subr.mxu0 0.0
  %322 = vmatpush1.msra.mxu0 0.0
  %323 = vmatprep.subr.mxu0 0.0
  %324 = vmatpush1.msra.mxu0 0.0
  %325 = vmatprep.subr.mxu0 0.0
  %326 = vmatpush1.msra.mxu0 0.0
  %327 = vmatprep.subr.mxu0 0.0
  %328 = vmatpush1.msra.mxu0 0.0
  %329 = vmatprep.subr.mxu0 0.0
  %330 = vmatpush1.msra.mxu0 0.0
  %331 = vmatprep.subr.mxu0 0.0
  %332 = vmatpush1.msra.mxu0 0.0
  %333 = vmatprep.subr.mxu0 0.0
  %334 = vmatpush1.msra.mxu0 0.0
  %335 = vmatprep.subr.mxu0 0.0
  %336 = vmatpush1.msra.mxu0 0.0
  %337 = vmatprep.subr.mxu0 0.0
  %338 = vmatpush1.msra.mxu0 0.0
  %339 = vmatprep.subr.mxu0 0.0
  %340 = vmatpush1.msra.mxu0 0.0
  %341 = vmatprep.subr.mxu0 0.0
  %342 = vmatpush1.msra.mxu0 0.0
  %343 = vmatprep.subr.mxu0 0.0
  %344 = vmatpush1.msra.mxu0 0.0
  %345 = vmatprep.subr.mxu0 0.0
  %346 = vmatpush1.msra.mxu0 0.0
  %347 = vmatprep.subr.mxu0 0.0
  %348 = vmatpush1.msra.mxu0 0.0
  %349 = vmatprep.subr.mxu0 0.0
  %350 = vmatpush1.msra.mxu0 0.0
  %351 = vmatprep.subr.mxu0 0.0
  %352 = vmatpush1.msra.mxu0 0.0
  %353 = vmatprep.subr.mxu0 0.0
  %354 = vmatpush1.msra.mxu0 0.0
  %355 = vmatprep.mubr.f32.mxu0 0.0
  %356 = vmatmul.mubr.f32.gmra.mrb[0].mxu0 %v277
  %v357 = vpop.f32.mrb[0].mxu0
  %v358 = vadd.f32 %v258, %v357
  %v359 = vpop.f32.mrb[0].mxu0
  %360 = vmatprep.mubr.f32.mxu0 0.0
  %361 = vmatmul.mubr.f32.gmra.mrb[0].mxu0 %v280
  %v362 = vpop.f32.mrb[0].mxu0
  %v363 = vadd.f32 %v263, %v362
  %v364 = vpop.f32.mrb[0].mxu0
  %365 = vmatprep.mubr.f32.mxu0 0.0
  %366 = vmatmul.mubr.f32.gmra.mrb[0].mxu0 %v283
  %v367 = vpop.f32.mrb[0].mxu0
  %v368 = vadd.f32 %v268, %v367
  %v369 = vpop.f32.mrb[0].mxu0
  %370 = vmatprep.mubr.f32.mxu0 0.0
  %371 = vmatmul.mubr.f32.gmra.mrb[0].mxu0 %v286
  %v372 = vpop.f32.mrb[0].mxu0
  %v373 = vadd.f32 %v273, %v372
  %v374 = vpop.f32.mrb[0].mxu0
  %375 = vdwg.mxu0
  %376 = vmatprep.subr.mxu0 0.0
  %377 = vmatpush1.msra.mxu0 %v146
  %378 = vmatprep.subr.mxu0 0.0
  %379 = vmatpush1.msra.mxu0 %v151
  %380 = vmatprep.subr.mxu0 0.0
  %381 = vmatpush1.msra.mxu0 %v156
  %382 = vmatprep.subr.mxu0 0.0
  %383 = vmatpush1.msra.mxu0 %v161
  %384 = vmatprep.subr.mxu0 0.0
  %385 = vmatpush1.msra.mxu0 0.0
  %386 = vmatprep.subr.mxu0 0.0
  %387 = vmatpush1.msra.mxu0 0.0
  %388 = vmatprep.subr.mxu0 0.0
  %389 = vmatpush1.msra.mxu0 0.0
  %390 = vmatprep.subr.mxu0 0.0
  %391 = vmatpush1.msra.mxu0 0.0
  %392 = vmatprep.subr.mxu0 0.0
  %393 = vmatpush1.msra.mxu0 0.0
  %394 = vmatprep.subr.mxu0 0.0
  %395 = vmatpush1.msra.mxu0 0.0
  %396 = vmatprep.subr.mxu0 0.0
  %397 = vmatpush1.msra.mxu0 0.0
  %398 = vmatprep.subr.mxu0 0.0
  %399 = vmatpush1.msra.mxu0 0.0
  %400 = vmatprep.subr.mxu0 0.0
  %401 = vmatpush1.msra.mxu0 0.0
  %402 = vmatprep.subr.mxu0 0.0
  %403 = vmatpush1.msra.mxu0 0.0
  %404 = vmatprep.subr.mxu0 0.0
  %405 = vmatpush1.msra.mxu0 0.0
  %406 = vmatprep.subr.mxu0 0.0
  %407 = vmatpush1.msra.mxu0 0.0
  %408 = vmatprep.subr.mxu0 0.0
  %409 = vmatpush1.msra.mxu0 0.0
  %410 = vmatprep.subr.mxu0 0.0
  %411 = vmatpush1.msra.mxu0 0.0
  %412 = vmatprep.subr.mxu0 0.0
  %413 = vmatpush1.msra.mxu0 0.0
  %414 = vmatprep.subr.mxu0 0.0
  %415 = vmatpush1.msra.mxu0 0.0
  %416 = vmatprep.subr.mxu0 0.0
  %417 = vmatpush1.msra.mxu0 0.0
  %418 = vmatprep.subr.mxu0 0.0
  %419 = vmatpush1.msra.mxu0 0.0
  %420 = vmatprep.subr.mxu0 0.0
  %421 = vmatpush1.msra.mxu0 0.0
  %422 = vmatprep.subr.mxu0 0.0
  %423 = vmatpush1.msra.mxu0 0.0
  %424 = vmatprep.subr.mxu0 0.0
  %425 = vmatpush1.msra.mxu0 0.0
  %426 = vmatprep.subr.mxu0 0.0
  %427 = vmatpush1.msra.mxu0 0.0
  %428 = vmatprep.subr.mxu0 0.0
  %429 = vmatpush1.msra.mxu0 0.0
  %430 = vmatprep.subr.mxu0 0.0
  %431 = vmatpush1.msra.mxu0 0.0
  %432 = vmatprep.subr.mxu0 0.0
  %433 = vmatpush1.msra.mxu0 0.0
  %434 = vmatprep.subr.mxu0 0.0
  %435 = vmatpush1.msra.mxu0 0.0
  %436 = vmatprep.subr.mxu0 0.0
  %437 = vmatpush1.msra.mxu0 0.0
  %438 = vmatprep.subr.mxu0 0.0
  %439 = vmatpush1.msra.mxu0 0.0
  %440 = vmatprep.mubr.f32.mxu0 0.0
  %441 = vmatmul.mubr.f32.gmra.mrb[0].mxu0 %v68
  %v442 = vpop.f32.mrb[0].mxu0
  %v443 = vadd.f32 0.0, %v442
  %v444 = vpop.f32.mrb[0].mxu0
  %445 = vmatprep.mubr.f32.mxu0 0.0
  %446 = vmatmul.mubr.f32.gmra.mrb[0].mxu0 %v71
  %v447 = vpop.f32.mrb[0].mxu0
  %v448 = vadd.f32 0.0, %v447
  %v449 = vpop.f32.mrb[0].mxu0
  %450 = vmatprep.mubr.f32.mxu0 0.0
  %451 = vmatmul.mubr.f32.gmra.mrb[0].mxu0 %v74
  %v452 = vpop.f32.mrb[0].mxu0
  %v453 = vadd.f32 0.0, %v452
  %v454 = vpop.f32.mrb[0].mxu0
  %455 = vmatprep.mubr.f32.mxu0 0.0
  %456 = vmatmul.mubr.f32.gmra.mrb[0].mxu0 %v77
  %v457 = vpop.f32.mrb[0].mxu0
  %v458 = vadd.f32 0.0, %v457
  %v459 = vpop.f32.mrb[0].mxu0
  %460 = vdwg.mxu0
  %v461 = vmul.f32 %v443, 2.0
  %v462 = vmul.f32 %v448, 2.0
  %v463 = vmul.f32 %v453, 2.0
  %v464 = vmul.f32 %v458, 2.0
  %v465 = vsub.f32 %v461, %v49
  %v466 = vsub.f32 %v462, %v50
  %v467 = vsub.f32 %v463, %v51
  %v468 = vsub.f32 %v464, %v52
  %s469 = scalar_lea.vmem %s3, 144
  %v470 = vld [vmem:[%s469] sm:$0xff]
  %v471 = vld [vmem:[%s469 + $0x8] sm:$0xff]
  %v472 = vld [vmem:[%s469 + $0x10] sm:$0xff]
  %v473 = vld [vmem:[%s469 + $0x18] sm:$0xff]
  %v474 = vld [vmem:[%s469 + $0x20] sm:$0xff]
  %v475 = vld [vmem:[%s469 + $0x28] sm:$0xff]
  %v476 = vld [vmem:[%s469 + $0x30] sm:$0xff]
  %v477 = vld [vmem:[%s469 + $0x38] sm:$0xff]
  %v478 = vld [vmem:[%s469 + $0x40] sm:$0xf]
  %v480 = vsel %vm174, %v465, 0
  %v483 = vsel %vm174, %v466, 0
  %v486 = vsel %vm174, %v467, 0
  %v489 = vsel %vm174, %v468, 0
  %v492 = vsel %vm187, %v478, 0
  %494 = vmatprep.subr.mxu0 0.0
  %495 = vmatpush1.msra.mxu0 %v470
  %496 = vmatprep.subr.mxu0 0.0
  %497 = vmatpush1.msra.mxu0 %v471
  %498 = vmatprep.subr.mxu0 0.0
  %499 = vmatpush1.msra.mxu0 %v472
  %500 = vmatprep.subr.mxu0 0.0
  %501 = vmatpush1.msra.mxu0 %v473
  %502 = vmatprep.subr.mxu0 0.0
  %503 = vmatpush1.msra.mxu0 %v474
  %504 = vmatprep.subr.mxu0 0.0
  %505 = vmatpush1.msra.mxu0 %v475
  %506 = vmatprep.subr.mxu0 0.0
  %507 = vmatpush1.msra.mxu0 %v476
  %508 = vmatprep.subr.mxu0 0.0
  %509 = vmatpush1.msra.mxu0 %v477
  %510 = vmatprep.subr.mxu0 0.0
  %511 = vmatpush1.msra.mxu0 %v492
  %512 = vmatprep.subr.mxu0 0.0
  %513 = vmatpush1.msra.mxu0 0.0
  %514 = vmatprep.subr.mxu0 0.0
  %515 = vmatpush1.msra.mxu0 0.0
  %516 = vmatprep.subr.mxu0 0.0
  %517 = vmatpush1.msra.mxu0 0.0
  %518 = vmatprep.subr.mxu0 0.0
  %519 = vmatpush1.msra.mxu0 0.0
  %520 = vmatprep.subr.mxu0 0.0
  %521 = vmatpush1.msra.mxu0 0.0
  %522 = vmatprep.subr.mxu0 0.0
  %523 = vmatpush1.msra.mxu0 0.0
  %524 = vmatprep.subr.mxu0 0.0
  %525 = vmatpush1.msra.mxu0 0.0
  %526 = vmatprep.subr.mxu0 0.0
  %527 = vmatpush1.msra.mxu0 0.0
  %528 = vmatprep.subr.mxu0 0.0
  %529 = vmatpush1.msra.mxu0 0.0
  %530 = vmatprep.subr.mxu0 0.0
  %531 = vmatpush1.msra.mxu0 0.0
  %532 = vmatprep.subr.mxu0 0.0
  %533 = vmatpush1.msra.mxu0 0.0
  %534 = vmatprep.subr.mxu0 0.0
  %535 = vmatpush1.msra.mxu0 0.0
  %536 = vmatprep.subr.mxu0 0.0
  %537 = vmatpush1.msra.mxu0 0.0
  %538 = vmatprep.subr.mxu0 0.0
  %539 = vmatpush1.msra.mxu0 0.0
  %540 = vmatprep.subr.mxu0 0.0
  %541 = vmatpush1.msra.mxu0 0.0
  %542 = vmatprep.subr.mxu0 0.0
  %543 = vmatpush1.msra.mxu0 0.0
  %544 = vmatprep.subr.mxu0 0.0
  %545 = vmatpush1.msra.mxu0 0.0
  %546 = vmatprep.subr.mxu0 0.0
  %547 = vmatpush1.msra.mxu0 0.0
  %548 = vmatprep.subr.mxu0 0.0
  %549 = vmatpush1.msra.mxu0 0.0
  %550 = vmatprep.subr.mxu0 0.0
  %551 = vmatpush1.msra.mxu0 0.0
  %552 = vmatprep.subr.mxu0 0.0
  %553 = vmatpush1.msra.mxu0 0.0
  %554 = vmatprep.subr.mxu0 0.0
  %555 = vmatpush1.msra.mxu0 0.0
  %556 = vmatprep.subr.mxu0 0.0
  %557 = vmatpush1.msra.mxu0 0.0
  %558 = vmatprep.mubr.f32.mxu0 0.0
  %559 = vmatmul.mubr.f32.gmra.mrb[0].mxu0 %v480
  %v560 = vpop.f32.mrb[0].mxu0
  %v561 = vadd.f32 0.0, %v560
  %v562 = vpop.f32.mrb[0].mxu0
  %563 = vmatprep.mubr.f32.mxu0 0.0
  %564 = vmatmul.mubr.f32.gmra.mrb[0].mxu0 %v483
  %v565 = vpop.f32.mrb[0].mxu0
  %v566 = vadd.f32 0.0, %v565
  %v567 = vpop.f32.mrb[0].mxu0
  %568 = vmatprep.mubr.f32.mxu0 0.0
  %569 = vmatmul.mubr.f32.gmra.mrb[0].mxu0 %v486
  %v570 = vpop.f32.mrb[0].mxu0
  %v571 = vadd.f32 0.0, %v570
  %v572 = vpop.f32.mrb[0].mxu0
  %573 = vmatprep.mubr.f32.mxu0 0.0
  %574 = vmatmul.mubr.f32.gmra.mrb[0].mxu0 %v489
  %v575 = vpop.f32.mrb[0].mxu0
  %v576 = vadd.f32 0.0, %v575
  %v577 = vpop.f32.mrb[0].mxu0
  %578 = vdwg.mxu0
  %v579 = vadd.f32 %v358, %v561
  %v580 = vadd.f32 %v363, %v566
  %v581 = vadd.f32 %v368, %v571
  %v582 = vadd.f32 %v373, %v576
  %v583 = vld [vmem:[%s4] sm:$0x1]
  %v585 = vlaneseq
  %v586 = vshrl.u32 %v585, 7
  %v587 = vsub.s32 0, %v586
  %v588 = vrot.slane %v583, %v587
  %v590 = vadd.f32 %v579, %v588
  %v591 = vadd.f32 %v580, %v588
  %v592 = vadd.f32 %v581, %v588
  %v593 = vadd.f32 %v582, %v588
  %s594 = scalar_lea.vmem %s2, 32
  %v595 = vld [vmem:[%s594] sm:$0xff]
  %v596 = vld [vmem:[%s594 + $0x8] sm:$0xff]
  %v597 = vld [vmem:[%s594 + $0x10] sm:$0xff]
  %v598 = vld [vmem:[%s594 + $0x18] sm:$0xff]
  %v599 = vld [vmem:[%s5] sm:$0xff]
  %v600 = vld [vmem:[%s5 + $0x8] sm:$0xff]
  %v601 = vld [vmem:[%s5 + $0x10] sm:$0xff]
  %v602 = vld [vmem:[%s5 + $0x18] sm:$0xff]
  %v604 = vsel %vm66, %v595, 0
  %v607 = vsel %vm66, %v596, 0
  %v610 = vsel %vm66, %v597, 0
  %v613 = vsel %vm66, %v598, 0
  %615 = vmatprep.subr.mxu0 0.0
  %616 = vmatpush1.msra.mxu0 %v590
  %617 = vmatprep.subr.mxu0 0.0
  %618 = vmatpush1.msra.mxu0 %v591
  %619 = vmatprep.subr.mxu0 0.0
  %620 = vmatpush1.msra.mxu0 %v592
  %621 = vmatprep.subr.mxu0 0.0
  %622 = vmatpush1.msra.mxu0 %v593
  %623 = vmatprep.subr.mxu0 0.0
  %624 = vmatpush1.msra.mxu0 0.0
  %625 = vmatprep.subr.mxu0 0.0
  %626 = vmatpush1.msra.mxu0 0.0
  %627 = vmatprep.subr.mxu0 0.0
  %628 = vmatpush1.msra.mxu0 0.0
  %629 = vmatprep.subr.mxu0 0.0
  %630 = vmatpush1.msra.mxu0 0.0
  %631 = vmatprep.subr.mxu0 0.0
  %632 = vmatpush1.msra.mxu0 0.0
  %633 = vmatprep.subr.mxu0 0.0
  %634 = vmatpush1.msra.mxu0 0.0
  %635 = vmatprep.subr.mxu0 0.0
  %636 = vmatpush1.msra.mxu0 0.0
  %637 = vmatprep.subr.mxu0 0.0
  %638 = vmatpush1.msra.mxu0 0.0
  %639 = vmatprep.subr.mxu0 0.0
  %640 = vmatpush1.msra.mxu0 0.0
  %641 = vmatprep.subr.mxu0 0.0
  %642 = vmatpush1.msra.mxu0 0.0
  %643 = vmatprep.subr.mxu0 0.0
  %644 = vmatpush1.msra.mxu0 0.0
  %645 = vmatprep.subr.mxu0 0.0
  %646 = vmatpush1.msra.mxu0 0.0
  %647 = vmatprep.subr.mxu0 0.0
  %648 = vmatpush1.msra.mxu0 0.0
  %649 = vmatprep.subr.mxu0 0.0
  %650 = vmatpush1.msra.mxu0 0.0
  %651 = vmatprep.subr.mxu0 0.0
  %652 = vmatpush1.msra.mxu0 0.0
  %653 = vmatprep.subr.mxu0 0.0
  %654 = vmatpush1.msra.mxu0 0.0
  %655 = vmatprep.subr.mxu0 0.0
  %656 = vmatpush1.msra.mxu0 0.0
  %657 = vmatprep.subr.mxu0 0.0
  %658 = vmatpush1.msra.mxu0 0.0
  %659 = vmatprep.subr.mxu0 0.0
  %660 = vmatpush1.msra.mxu0 0.0
  %661 = vmatprep.subr.mxu0 0.0
  %662 = vmatpush1.msra.mxu0 0.0
  %663 = vmatprep.subr.mxu0 0.0
  %664 = vmatpush1.msra.mxu0 0.0
  %665 = vmatprep.subr.mxu0 0.0
  %666 = vmatpush1.msra.mxu0 0.0
  %667 = vmatprep.subr.mxu0 0.0
  %668 = vmatpush1.msra.mxu0 0.0
  %669 = vmatprep.subr.mxu0 0.0
  %670 = vmatpush1.msra.mxu0 0.0
  %671 = vmatprep.subr.mxu0 0.0
  %672 = vmatpush1.msra.mxu0 0.0
  %673 = vmatprep.subr.mxu0 0.0
  %674 = vmatpush1.msra.mxu0 0.0
  %675 = vmatprep.subr.mxu0 0.0
  %676 = vmatpush1.msra.mxu0 0.0
  %677 = vmatprep.subr.mxu0 0.0
  %678 = vmatpush1.msra.mxu0 0.0
  %679 = vmatprep.mubr.f32.mxu0 0.0
  %680 = vmatmul.mubr.f32.gmra.mrb[0].mxu0 %v604
  %v681 = vpop.f32.mrb[0].mxu0
  %v682 = vadd.f32 0.0, %v681
  %v683 = vpop.f32.mrb[0].mxu0
  %684 = vmatprep.mubr.f32.mxu0 0.0
  %685 = vmatmul.mubr.f32.gmra.mrb[0].mxu0 %v607
  %v686 = vpop.f32.mrb[0].mxu0
  %v687 = vadd.f32 0.0, %v686
  %v688 = vpop.f32.mrb[0].mxu0
  %689 = vmatprep.mubr.f32.mxu0 0.0
  %690 = vmatmul.mubr.f32.gmra.mrb[0].mxu0 %v610
  %v691 = vpop.f32.mrb[0].mxu0
  %v692 = vadd.f32 0.0, %v691
  %v693 = vpop.f32.mrb[0].mxu0
  %694 = vmatprep.mubr.f32.mxu0 0.0
  %695 = vmatmul.mubr.f32.gmra.mrb[0].mxu0 %v613
  %v696 = vpop.f32.mrb[0].mxu0
  %v697 = vadd.f32 0.0, %v696
  %v698 = vpop.f32.mrb[0].mxu0
  %699 = vdwg.mxu0
  %s700 = scalar_lea.vmem %s5, 32
  %v701 = vld [vmem:[%s700] sm:$0xff]
  %v702 = vld [vmem:[%s700 + $0x8] sm:$0xff]
  %v703 = vld [vmem:[%s700 + $0x10] sm:$0xff]
  %v704 = vld [vmem:[%s700 + $0x18] sm:$0xff]
  %v706 = vsel %vm66, %v682, 0
  %v709 = vsel %vm66, %v687, 0
  %v712 = vsel %vm66, %v692, 0
  %v715 = vsel %vm66, %v697, 0
  %717 = vmatprep.subr.mxu0 0.0
  %718 = vmatpush1.msra.mxu0 %v701
  %719 = vmatprep.subr.mxu0 0.0
  %720 = vmatpush1.msra.mxu0 %v702
  %721 = vmatprep.subr.mxu0 0.0
  %722 = vmatpush1.msra.mxu0 %v703
  %723 = vmatprep.subr.mxu0 0.0
  %724 = vmatpush1.msra.mxu0 %v704
  %725 = vmatprep.subr.mxu0 0.0
  %726 = vmatpush1.msra.mxu0 0.0
  %727 = vmatprep.subr.mxu0 0.0
  %728 = vmatpush1.msra.mxu0 0.0
  %729 = vmatprep.subr.mxu0 0.0
  %730 = vmatpush1.msra.mxu0 0.0
  %731 = vmatprep.subr.mxu0 0.0
  %732 = vmatpush1.msra.mxu0 0.0
  %733 = vmatprep.subr.mxu0 0.0
  %734 = vmatpush1.msra.mxu0 0.0
  %735 = vmatprep.subr.mxu0 0.0
  %736 = vmatpush1.msra.mxu0 0.0
  %737 = vmatprep.subr.mxu0 0.0
  %738 = vmatpush1.msra.mxu0 0.0
  %739 = vmatprep.subr.mxu0 0.0
  %740 = vmatpush1.msra.mxu0 0.0
  %741 = vmatprep.subr.mxu0 0.0
  %742 = vmatpush1.msra.mxu0 0.0
  %743 = vmatprep.subr.mxu0 0.0
  %744 = vmatpush1.msra.mxu0 0.0
  %745 = vmatprep.subr.mxu0 0.0
  %746 = vmatpush1.msra.mxu0 0.0
  %747 = vmatprep.subr.mxu0 0.0
  %748 = vmatpush1.msra.mxu0 0.0
  %749 = vmatprep.subr.mxu0 0.0
  %750 = vmatpush1.msra.mxu0 0.0
  %751 = vmatprep.subr.mxu0 0.0
  %752 = vmatpush1.msra.mxu0 0.0
  %753 = vmatprep.subr.mxu0 0.0
  %754 = vmatpush1.msra.mxu0 0.0
  %755 = vmatprep.subr.mxu0 0.0
  %756 = vmatpush1.msra.mxu0 0.0
  %757 = vmatprep.subr.mxu0 0.0
  %758 = vmatpush1.msra.mxu0 0.0
  %759 = vmatprep.subr.mxu0 0.0
  %760 = vmatpush1.msra.mxu0 0.0
  %761 = vmatprep.subr.mxu0 0.0
  %762 = vmatpush1.msra.mxu0 0.0
  %763 = vmatprep.subr.mxu0 0.0
  %764 = vmatpush1.msra.mxu0 0.0
  %765 = vmatprep.subr.mxu0 0.0
  %766 = vmatpush1.msra.mxu0 0.0
  %767 = vmatprep.subr.mxu0 0.0
  %768 = vmatpush1.msra.mxu0 0.0
  %769 = vmatprep.subr.mxu0 0.0
  %770 = vmatpush1.msra.mxu0 0.0
  %771 = vmatprep.subr.mxu0 0.0
  %772 = vmatpush1.msra.mxu0 0.0
  %773 = vmatprep.subr.mxu0 0.0
  %774 = vmatpush1.msra.mxu0 0.0
  %775 = vmatprep.subr.mxu0 0.0
  %776 = vmatpush1.msra.mxu0 0.0
  %777 = vmatprep.subr.mxu0 0.0
  %778 = vmatpush1.msra.mxu0 0.0
  %779 = vmatprep.subr.mxu0 0.0
  %780 = vmatpush1.msra.mxu0 0.0
  %781 = vmatprep.mubr.f32.mxu0 0.0
  %782 = vmatmul.mubr.f32.gmra.mrb[0].mxu0 %v706
  %v783 = vpop.f32.mrb[0].mxu0
  %v784 = vadd.f32 0.0, %v783
  %v785 = vpop.f32.mrb[0].mxu0
  %786 = vmatprep.mubr.f32.mxu0 0.0
  %787 = vmatmul.mubr.f32.gmra.mrb[0].mxu0 %v709
  %v788 = vpop.f32.mrb[0].mxu0
  %v789 = vadd.f32 0.0, %v788
  %v790 = vpop.f32.mrb[0].mxu0
  %791 = vmatprep.mubr.f32.mxu0 0.0
  %792 = vmatmul.mubr.f32.gmra.mrb[0].mxu0 %v712
  %v793 = vpop.f32.mrb[0].mxu0
  %v794 = vadd.f32 0.0, %v793
  %v795 = vpop.f32.mrb[0].mxu0
  %796 = vmatprep.mubr.f32.mxu0 0.0
  %797 = vmatmul.mubr.f32.gmra.mrb[0].mxu0 %v715
  %v798 = vpop.f32.mrb[0].mxu0
  %v799 = vadd.f32 0.0, %v798
  %v800 = vpop.f32.mrb[0].mxu0
  %801 = vdwg.mxu0
  %v803 = vsel %vm66, %v590, 0
  %v806 = vsel %vm66, %v591, 0
  %v809 = vsel %vm66, %v592, 0
  %v812 = vsel %vm66, %v593, 0
  %814 = vmatprep.subr.mxu0 0.0
  %815 = vmatpush1.msra.mxu0 %v599
  %816 = vmatprep.subr.mxu0 0.0
  %817 = vmatpush1.msra.mxu0 %v600
  %818 = vmatprep.subr.mxu0 0.0
  %819 = vmatpush1.msra.mxu0 %v601
  %820 = vmatprep.subr.mxu0 0.0
  %821 = vmatpush1.msra.mxu0 %v602
  %822 = vmatprep.subr.mxu0 0.0
  %823 = vmatpush1.msra.mxu0 0.0
  %824 = vmatprep.subr.mxu0 0.0
  %825 = vmatpush1.msra.mxu0 0.0
  %826 = vmatprep.subr.mxu0 0.0
  %827 = vmatpush1.msra.mxu0 0.0
  %828 = vmatprep.subr.mxu0 0.0
  %829 = vmatpush1.msra.mxu0 0.0
  %830 = vmatprep.subr.mxu0 0.0
  %831 = vmatpush1.msra.mxu0 0.0
  %832 = vmatprep.subr.mxu0 0.0
  %833 = vmatpush1.msra.mxu0 0.0
  %834 = vmatprep.subr.mxu0 0.0
  %835 = vmatpush1.msra.mxu0 0.0
  %836 = vmatprep.subr.mxu0 0.0
  %837 = vmatpush1.msra.mxu0 0.0
  %838 = vmatprep.subr.mxu0 0.0
  %839 = vmatpush1.msra.mxu0 0.0
  %840 = vmatprep.subr.mxu0 0.0
  %841 = vmatpush1.msra.mxu0 0.0
  %842 = vmatprep.subr.mxu0 0.0
  %843 = vmatpush1.msra.mxu0 0.0
  %844 = vmatprep.subr.mxu0 0.0
  %845 = vmatpush1.msra.mxu0 0.0
  %846 = vmatprep.subr.mxu0 0.0
  %847 = vmatpush1.msra.mxu0 0.0
  %848 = vmatprep.subr.mxu0 0.0
  %849 = vmatpush1.msra.mxu0 0.0
  %850 = vmatprep.subr.mxu0 0.0
  %851 = vmatpush1.msra.mxu0 0.0
  %852 = vmatprep.subr.mxu0 0.0
  %853 = vmatpush1.msra.mxu0 0.0
  %854 = vmatprep.subr.mxu0 0.0
  %855 = vmatpush1.msra.mxu0 0.0
  %856 = vmatprep.subr.mxu0 0.0
  %857 = vmatpush1.msra.mxu0 0.0
  %858 = vmatprep.subr.mxu0 0.0
  %859 = vmatpush1.msra.mxu0 0.0
  %860 = vmatprep.subr.mxu0 0.0
  %861 = vmatpush1.msra.mxu0 0.0
  %862 = vmatprep.subr.mxu0 0.0
  %863 = vmatpush1.msra.mxu0 0.0
  %864 = vmatprep.subr.mxu0 0.0
  %865 = vmatpush1.msra.mxu0 0.0
  %866 = vmatprep.subr.mxu0 0.0
  %867 = vmatpush1.msra.mxu0 0.0
  %868 = vmatprep.subr.mxu0 0.0
  %869 = vmatpush1.msra.mxu0 0.0
  %870 = vmatprep.subr.mxu0 0.0
  %871 = vmatpush1.msra.mxu0 0.0
  %872 = vmatprep.subr.mxu0 0.0
  %873 = vmatpush1.msra.mxu0 0.0
  %874 = vmatprep.subr.mxu0 0.0
  %875 = vmatpush1.msra.mxu0 0.0
  %876 = vmatprep.subr.mxu0 0.0
  %877 = vmatpush1.msra.mxu0 0.0
  %878 = vmatprep.mubr.f32.mxu0 0.0
  %879 = vmatmul.mubr.f32.gmra.mrb[0].mxu0 %v803
  %v880 = vpop.f32.mrb[0].mxu0
  %v881 = vadd.f32 %v784, %v880
  %v882 = vpop.f32.mrb[0].mxu0
  %883 = vmatprep.mubr.f32.mxu0 0.0
  %884 = vmatmul.mubr.f32.gmra.mrb[0].mxu0 %v806
  %v885 = vpop.f32.mrb[0].mxu0
  %v886 = vadd.f32 %v789, %v885
  %v887 = vpop.f32.mrb[0].mxu0
  %888 = vmatprep.mubr.f32.mxu0 0.0
  %889 = vmatmul.mubr.f32.gmra.mrb[0].mxu0 %v809
  %v890 = vpop.f32.mrb[0].mxu0
  %v891 = vadd.f32 %v794, %v890
  %v892 = vpop.f32.mrb[0].mxu0
  %893 = vmatprep.mubr.f32.mxu0 0.0
  %894 = vmatmul.mubr.f32.gmra.mrb[0].mxu0 %v812
  %v895 = vpop.f32.mrb[0].mxu0
  %v896 = vadd.f32 %v799, %v895
  %v897 = vpop.f32.mrb[0].mxu0
  %898 = vdwg.mxu0
  %899 = vmatprep.subr.mxu0 0.0
  %900 = vmatpush1.msra.mxu0 %v682
  %901 = vmatprep.subr.mxu0 0.0
  %902 = vmatpush1.msra.mxu0 %v687
  %903 = vmatprep.subr.mxu0 0.0
  %904 = vmatpush1.msra.mxu0 %v692
  %905 = vmatprep.subr.mxu0 0.0
  %906 = vmatpush1.msra.mxu0 %v697
  %907 = vmatprep.subr.mxu0 0.0
  %908 = vmatpush1.msra.mxu0 0.0
  %909 = vmatprep.subr.mxu0 0.0
  %910 = vmatpush1.msra.mxu0 0.0
  %911 = vmatprep.subr.mxu0 0.0
  %912 = vmatpush1.msra.mxu0 0.0
  %913 = vmatprep.subr.mxu0 0.0
  %914 = vmatpush1.msra.mxu0 0.0
  %915 = vmatprep.subr.mxu0 0.0
  %916 = vmatpush1.msra.mxu0 0.0
  %917 = vmatprep.subr.mxu0 0.0
  %918 = vmatpush1.msra.mxu0 0.0
  %919 = vmatprep.subr.mxu0 0.0
  %920 = vmatpush1.msra.mxu0 0.0
  %921 = vmatprep.subr.mxu0 0.0
  %922 = vmatpush1.msra.mxu0 0.0
  %923 = vmatprep.subr.mxu0 0.0
  %924 = vmatpush1.msra.mxu0 0.0
  %925 = vmatprep.subr.mxu0 0.0
  %926 = vmatpush1.msra.mxu0 0.0
  %927 = vmatprep.subr.mxu0 0.0
  %928 = vmatpush1.msra.mxu0 0.0
  %929 = vmatprep.subr.mxu0 0.0
  %930 = vmatpush1.msra.mxu0 0.0
  %931 = vmatprep.subr.mxu0 0.0
  %932 = vmatpush1.msra.mxu0 0.0
  %933 = vmatprep.subr.mxu0 0.0
  %934 = vmatpush1.msra.mxu0 0.0
  %935 = vmatprep.subr.mxu0 0.0
  %936 = vmatpush1.msra.mxu0 0.0
  %937 = vmatprep.subr.mxu0 0.0
  %938 = vmatpush1.msra.mxu0 0.0
  %939 = vmatprep.subr.mxu0 0.0
  %940 = vmatpush1.msra.mxu0 0.0
  %941 = vmatprep.subr.mxu0 0.0
  %942 = vmatpush1.msra.mxu0 0.0
  %943 = vmatprep.subr.mxu0 0.0
  %944 = vmatpush1.msra.mxu0 0.0
  %945 = vmatprep.subr.mxu0 0.0
  %946 = vmatpush1.msra.mxu0 0.0
  %947 = vmatprep.subr.mxu0 0.0
  %948 = vmatpush1.msra.mxu0 0.0
  %949 = vmatprep.subr.mxu0 0.0
  %950 = vmatpush1.msra.mxu0 0.0
  %951 = vmatprep.subr.mxu0 0.0
  %952 = vmatpush1.msra.mxu0 0.0
  %953 = vmatprep.subr.mxu0 0.0
  %954 = vmatpush1.msra.mxu0 0.0
  %955 = vmatprep.subr.mxu0 0.0
  %956 = vmatpush1.msra.mxu0 0.0
  %957 = vmatprep.subr.mxu0 0.0
  %958 = vmatpush1.msra.mxu0 0.0
  %959 = vmatprep.subr.mxu0 0.0
  %960 = vmatpush1.msra.mxu0 0.0
  %961 = vmatprep.subr.mxu0 0.0
  %962 = vmatpush1.msra.mxu0 0.0
  %963 = vmatprep.mubr.f32.mxu0 0.0
  %964 = vmatmul.mubr.f32.gmra.mrb[0].mxu0 %v604
  %v965 = vpop.f32.mrb[0].mxu0
  %v966 = vadd.f32 0.0, %v965
  %v967 = vpop.f32.mrb[0].mxu0
  %968 = vmatprep.mubr.f32.mxu0 0.0
  %969 = vmatmul.mubr.f32.gmra.mrb[0].mxu0 %v607
  %v970 = vpop.f32.mrb[0].mxu0
  %v971 = vadd.f32 0.0, %v970
  %v972 = vpop.f32.mrb[0].mxu0
  %973 = vmatprep.mubr.f32.mxu0 0.0
  %974 = vmatmul.mubr.f32.gmra.mrb[0].mxu0 %v610
  %v975 = vpop.f32.mrb[0].mxu0
  %v976 = vadd.f32 0.0, %v975
  %v977 = vpop.f32.mrb[0].mxu0
  %978 = vmatprep.mubr.f32.mxu0 0.0
  %979 = vmatmul.mubr.f32.gmra.mrb[0].mxu0 %v613
  %v980 = vpop.f32.mrb[0].mxu0
  %v981 = vadd.f32 0.0, %v980
  %v982 = vpop.f32.mrb[0].mxu0
  %983 = vdwg.mxu0
  %v984 = vmul.f32 %v966, 2.0
  %v985 = vmul.f32 %v971, 2.0
  %v986 = vmul.f32 %v976, 2.0
  %v987 = vmul.f32 %v981, 2.0
  %v988 = vsub.f32 %v984, %v590
  %v989 = vsub.f32 %v985, %v591
  %v990 = vsub.f32 %v986, %v592
  %v991 = vsub.f32 %v987, %v593
  %s992 = scalar_lea.vmem %s5, 64
  %v993 = vld [vmem:[%s992] sm:$0xff]
  %v994 = vld [vmem:[%s992 + $0x8] sm:$0xff]
  %v995 = vld [vmem:[%s992 + $0x10] sm:$0xff]
  %v996 = vld [vmem:[%s992 + $0x18] sm:$0xff]
  %v998 = vsel %vm66, %v988, 0
  %v1001 = vsel %vm66, %v989, 0
  %v1004 = vsel %vm66, %v990, 0
  %v1007 = vsel %vm66, %v991, 0
  %1009 = vmatprep.subr.mxu0 0.0
  %1010 = vmatpush1.msra.mxu0 %v993
  %1011 = vmatprep.subr.mxu0 0.0
  %1012 = vmatpush1.msra.mxu0 %v994
  %1013 = vmatprep.subr.mxu0 0.0
  %1014 = vmatpush1.msra.mxu0 %v995
  %1015 = vmatprep.subr.mxu0 0.0
  %1016 = vmatpush1.msra.mxu0 %v996
  %1017 = vmatprep.subr.mxu0 0.0
  %1018 = vmatpush1.msra.mxu0 0.0
  %1019 = vmatprep.subr.mxu0 0.0
  %1020 = vmatpush1.msra.mxu0 0.0
  %1021 = vmatprep.subr.mxu0 0.0
  %1022 = vmatpush1.msra.mxu0 0.0
  %1023 = vmatprep.subr.mxu0 0.0
  %1024 = vmatpush1.msra.mxu0 0.0
  %1025 = vmatprep.subr.mxu0 0.0
  %1026 = vmatpush1.msra.mxu0 0.0
  %1027 = vmatprep.subr.mxu0 0.0
  %1028 = vmatpush1.msra.mxu0 0.0
  %1029 = vmatprep.subr.mxu0 0.0
  %1030 = vmatpush1.msra.mxu0 0.0
  %1031 = vmatprep.subr.mxu0 0.0
  %1032 = vmatpush1.msra.mxu0 0.0
  %1033 = vmatprep.subr.mxu0 0.0
  %1034 = vmatpush1.msra.mxu0 0.0
  %1035 = vmatprep.subr.mxu0 0.0
  %1036 = vmatpush1.msra.mxu0 0.0
  %1037 = vmatprep.subr.mxu0 0.0
  %1038 = vmatpush1.msra.mxu0 0.0
  %1039 = vmatprep.subr.mxu0 0.0
  %1040 = vmatpush1.msra.mxu0 0.0
  %1041 = vmatprep.subr.mxu0 0.0
  %1042 = vmatpush1.msra.mxu0 0.0
  %1043 = vmatprep.subr.mxu0 0.0
  %1044 = vmatpush1.msra.mxu0 0.0
  %1045 = vmatprep.subr.mxu0 0.0
  %1046 = vmatpush1.msra.mxu0 0.0
  %1047 = vmatprep.subr.mxu0 0.0
  %1048 = vmatpush1.msra.mxu0 0.0
  %1049 = vmatprep.subr.mxu0 0.0
  %1050 = vmatpush1.msra.mxu0 0.0
  %1051 = vmatprep.subr.mxu0 0.0
  %1052 = vmatpush1.msra.mxu0 0.0
  %1053 = vmatprep.subr.mxu0 0.0
  %1054 = vmatpush1.msra.mxu0 0.0
  %1055 = vmatprep.subr.mxu0 0.0
  %1056 = vmatpush1.msra.mxu0 0.0
  %1057 = vmatprep.subr.mxu0 0.0
  %1058 = vmatpush1.msra.mxu0 0.0
  %1059 = vmatprep.subr.mxu0 0.0
  %1060 = vmatpush1.msra.mxu0 0.0
  %1061 = vmatprep.subr.mxu0 0.0
  %1062 = vmatpush1.msra.mxu0 0.0
  %1063 = vmatprep.subr.mxu0 0.0
  %1064 = vmatpush1.msra.mxu0 0.0
  %1065 = vmatprep.subr.mxu0 0.0
  %1066 = vmatpush1.msra.mxu0 0.0
  %1067 = vmatprep.subr.mxu0 0.0
  %1068 = vmatpush1.msra.mxu0 0.0
  %1069 = vmatprep.subr.mxu0 0.0
  %1070 = vmatpush1.msra.mxu0 0.0
  %1071 = vmatprep.subr.mxu0 0.0
  %1072 = vmatpush1.msra.mxu0 0.0
  %1073 = vmatprep.mubr.f32.mxu0 0.0
  %1074 = vmatmul.mubr.f32.gmra.mrb[0].mxu0 %v998
  %v1075 = vpop.f32.mrb[0].mxu0
  %v1076 = vadd.f32 0.0, %v1075
  %v1077 = vpop.f32.mrb[0].mxu0
  %1078 = vmatprep.mubr.f32.mxu0 0.0
  %1079 = vmatmul.mubr.f32.gmra.mrb[0].mxu0 %v1001
  %v1080 = vpop.f32.mrb[0].mxu0
  %v1081 = vadd.f32 0.0, %v1080
  %v1082 = vpop.f32.mrb[0].mxu0
  %1083 = vmatprep.mubr.f32.mxu0 0.0
  %1084 = vmatmul.mubr.f32.gmra.mrb[0].mxu0 %v1004
  %v1085 = vpop.f32.mrb[0].mxu0
  %v1086 = vadd.f32 0.0, %v1085
  %v1087 = vpop.f32.mrb[0].mxu0
  %1088 = vmatprep.mubr.f32.mxu0 0.0
  %1089 = vmatmul.mubr.f32.gmra.mrb[0].mxu0 %v1007
  %v1090 = vpop.f32.mrb[0].mxu0
  %v1091 = vadd.f32 0.0, %v1090
  %v1092 = vpop.f32.mrb[0].mxu0
  %1093 = vdwg.mxu0
  %v1094 = vadd.f32 %v881, %v1076
  %v1095 = vadd.f32 %v886, %v1081
  %v1096 = vadd.f32 %v891, %v1086
  %v1097 = vadd.f32 %v896, %v1091
  %v1098 = vld [vmem:[%s6] sm:$0x1]
  %v1100 = vlaneseq
  %v1101 = vshrl.u32 %v1100, 7
  %v1102 = vsub.s32 0, %v1101
  %v1103 = vrot.slane %v1098, %v1102
  %v1105 = vadd.f32 %v1094, %v1103
  %v1106 = vadd.f32 %v1095, %v1103
  %v1107 = vadd.f32 %v1096, %v1103
  %v1108 = vadd.f32 %v1097, %v1103
  %v1109 = vld [vmem:[%s7] sm:$0xff]
  %v1110 = vld [vmem:[%s7 + $0x8] sm:$0xff]
  %s1111 = sld [smem:[#allocation2]]
  %v1112 = vmul.f32 %v590, %v1109
  %v1113 = vmul.f32 %v591, %v1110
  %v1114 = vmul.f32 %v592, %v1109
  %v1115 = vmul.f32 %v593, %v1110
  %v1116 = vsel %vm66, %v1112, 0.0
  %1117 = vadd.xlane.f32.xlu0 %v1116
  %v1118 = vpop.xlane.xlu0 %1117
  %v1119 = vsel %vm66, %v1113, 0.0
  %1120 = vadd.xlane.f32.xlu0 %v1119
  %v1121 = vpop.xlane.xlu0 %1120
  %v1122 = vsel %vm66, %v1114, 0.0
  %1123 = vadd.xlane.f32.xlu0 %v1122
  %v1124 = vpop.xlane.xlu0 %1123
  %v1125 = vsel %vm66, %v1115, 0.0
  %1126 = vadd.xlane.f32.xlu0 %v1125
  %v1127 = vpop.xlane.xlu0 %1126
  %v1132 = vlaneseq
  %v1133 = vand.u32 %v1132, 127
  %v1134 = vlaneseq
  %v1135 = vshrl.u32 %v1134, 7
  %v1136 = vsub.s32 %v1133, %v1135
  %v1137 = vrot.slane %v1118, %v1136
  %v1138 = vadd.s32 %v1133, 4294967288
  %v1139 = vlaneseq
  %v1140 = vshrl.u32 %v1139, 7
  %v1141 = vsub.s32 %v1138, %v1140
  %v1142 = vrot.slane %v1121, %v1141
  %vm1143 = vcmask 130112
  %v1144 = vsel %vm1143, %v1142, %v1137
  %v1145 = vlaneseq
  %v1146 = vshrl.u32 %v1145, 7
  %v1147 = vsub.s32 %v1133, %v1146
  %v1148 = vrot.slane %v1124, %v1147
  %v1149 = vlaneseq
  %v1150 = vshrl.u32 %v1149, 7
  %v1151 = vsub.s32 %v1138, %v1150
  %v1152 = vrot.slane %v1127, %v1151
  %v1153 = vsel %vm1143, %v1152, %v1148
  %vm1154 = vcmask 1041409
  %v1155 = vsel %vm1154, %v1153, %v1144
  %vm1157 = vcmask 123904
  %v1158 = vsel %vm1157, %v1155, 0.0
  %1159 = vadd.xlane.f32.xlu0 %v1158
  %v1160 = vpop.xlane.xlu0 %1159
  %v1161 = vstv %s1111
  %v1162 = vadd.f32 %v1160, %v1161
  %v1163 = vmul.f32 %v1105, %v1109
  %v1164 = vmul.f32 %v1106, %v1110
  %v1165 = vmul.f32 %v1107, %v1109
  %v1166 = vmul.f32 %v1108, %v1110
  %v1167 = vsel %vm66, %v1163, 0.0
  %1168 = vadd.xlane.f32.xlu0 %v1167
  %v1169 = vpop.xlane.xlu0 %1168
  %v1170 = vsel %vm66, %v1164, 0.0
  %1171 = vadd.xlane.f32.xlu0 %v1170
  %v1172 = vpop.xlane.xlu0 %1171
  %v1173 = vsel %vm66, %v1165, 0.0
  %1174 = vadd.xlane.f32.xlu0 %v1173
  %v1175 = vpop.xlane.xlu0 %1174
  %v1176 = vsel %vm66, %v1166, 0.0
  %1177 = vadd.xlane.f32.xlu0 %v1176
  %v1178 = vpop.xlane.xlu0 %1177
  %v1183 = vlaneseq
  %v1184 = vshrl.u32 %v1183, 7
  %v1185 = vsub.s32 %v1133, %v1184
  %v1186 = vrot.slane %v1169, %v1185
  %v1187 = vlaneseq
  %v1188 = vshrl.u32 %v1187, 7
  %v1189 = vsub.s32 %v1138, %v1188
  %v1190 = vrot.slane %v1172, %v1189
  %v1191 = vsel %vm1143, %v1190, %v1186
  %v1192 = vlaneseq
  %v1193 = vshrl.u32 %v1192, 7
  %v1194 = vsub.s32 %v1133, %v1193
  %v1195 = vrot.slane %v1175, %v1194
  %v1196 = vlaneseq
  %v1197 = vshrl.u32 %v1196, 7
  %v1198 = vsub.s32 %v1138, %v1197
  %v1199 = vrot.slane %v1178, %v1198
  %v1200 = vsel %vm1143, %v1199, %v1195
  %v1201 = vsel %vm1154, %v1200, %v1191
  %v1203 = vsel %vm1157, %v1201, 0.0
  %1204 = vadd.xlane.f32.xlu0 %v1203
  %v1205 = vpop.xlane.xlu0 %1204
  %v1206 = vadd.f32 %v1205, %v1161
  %v1207 = vmax.f32 %v1162, %v1206
  %v1208 = vsub.f32 %v1162, %v1207
  %v1209 = vmul.f32 %v1208, 1.442695
  %v1210 = vpow.pop %v1209
  %v1211 = vsub.f32 %v1206, %v1207
  %v1212 = vmul.f32 %v1211, 1.442695
  %v1213 = vpow.pop %v1212
  %v1214 = vadd.f32 %v1210, %v1213
  %v1215 = vrcp.pop %v1214
  %v1216 = vmul.f32 %v1210, %v1215
  %v1218 = vlaneseq
  %v1219 = vshrl.u32 %v1218, 7
  %v1220 = vsub.s32 0, %v1219
  %v1221 = vrot.slane %v1216, %v1220
  %v1222 = vlaneseq
  %v1223 = vshrl.u32 %v1222, 7
  %v1224 = vsub.s32 1, %v1223
  %v1225 = vrot.slane %v1216, %v1224
  %v1228 = vmul.f32 %v1221, %v590
  %v1229 = vmul.f32 %v1221, %v591
  %v1230 = vmul.f32 %v1225, %v592
  %v1231 = vmul.f32 %v1225, %v593
  %v1232 = vmul.f32 %v1213, %v1215
  %v1234 = vlaneseq
  %v1235 = vshrl.u32 %v1234, 7
  %v1236 = vsub.s32 0, %v1235
  %v1237 = vrot.slane %v1232, %v1236
  %v1238 = vlaneseq
  %v1239 = vshrl.u32 %v1238, 7
  %v1240 = vsub.s32 1, %v1239
  %v1241 = vrot.slane %v1232, %v1240
  %v1244 = vmul.f32 %v1237, %v1105
  %v1245 = vmul.f32 %v1237, %v1106
  %v1246 = vmul.f32 %v1241, %v1107
  %v1247 = vmul.f32 %v1241, %v1108
  %v1248 = vadd.f32 %v1228, %v1244
  %v1249 = vadd.f32 %v1229, %v1245
  %v1250 = vadd.f32 %v1230, %v1246
  %v1251 = vadd.f32 %v1231, %v1247
  %v1252 = vld [vmem:[%s1] sm:$0xff]
  %v1253 = vld [vmem:[%s1 + $0x8] sm:$0xff]
  %v1254 = vld [vmem:[%s1 + $0x10] sm:$0xff]
  %v1255 = vld [vmem:[%s1 + $0x18] sm:$0xff]
  %v1256 = vld [vmem:[%s1 + $0x20] sm:$0xff]
  %v1257 = vld [vmem:[%s1 + $0x28] sm:$0xff]
  %v1258 = vld [vmem:[%s1 + $0x30] sm:$0xff]
  %v1259 = vld [vmem:[%s1 + $0x38] sm:$0xff]
  %v1260 = vld [vmem:[%s1 + $0x40] sm:$0xff]
  %v1261 = vld [vmem:[%s1 + $0x48] sm:$0xff]
  %v1262 = vld [vmem:[%s1 + $0x50] sm:$0xff]
  %v1263 = vld [vmem:[%s1 + $0x58] sm:$0xff]
  %v1264 = vld [vmem:[%s9] sm:$0xff]
  %v1265 = vld [vmem:[%s9 + $0x8] sm:$0xff]
  %v1266 = vadd.f32 %v1252, %v1264
  %v1267 = vadd.f32 %v1253, %v1265
  %v1268 = vadd.f32 %v1258, %v1264
  %v1269 = vadd.f32 %v1259, %v1265
  %s1270 = scalar_lea.vmem %s9, 16
  %v1271 = vld [vmem:[%s1270] sm:$0xff]
  %v1272 = vld [vmem:[%s1270 + $0x8] sm:$0xff]
  %v1273 = vadd.f32 %v1254, %v1271
  %v1274 = vadd.f32 %v1255, %v1272
  %v1275 = vadd.f32 %v1260, %v1271
  %v1276 = vadd.f32 %v1261, %v1272
  %s1277 = scalar_lea.vmem %s9, 32
  %v1278 = vld [vmem:[%s1277] sm:$0xff]
  %v1279 = vld [vmem:[%s1277 + $0x8] sm:$0xff]
  %v1280 = vadd.f32 %v1256, %v1278
  %v1281 = vadd.f32 %v1257, %v1279
  %v1282 = vadd.f32 %v1262, %v1278
  %v1283 = vadd.f32 %v1263, %v1279
  %v1284 = vld [vmem:[%s8] sm:$0xff]
  %v1285 = vld [vmem:[%s8 + $0x8] sm:$0xff]
  %s1286 = sld [smem:[#allocation3]]
  %v1287 = vmul.f32 %v1266, %v1284
  %v1288 = vmul.f32 %v1267, %v1285
  %v1289 = vmul.f32 %v1268, %v1284
  %v1290 = vmul.f32 %v1269, %v1285
  %v1291 = vsel %vm66, %v1287, 0.0
  %1292 = vadd.xlane.f32.xlu0 %v1291
  %v1293 = vpop.xlane.xlu0 %1292
  %v1294 = vsel %vm66, %v1288, 0.0
  %1295 = vadd.xlane.f32.xlu0 %v1294
  %v1296 = vpop.xlane.xlu0 %1295
  %v1297 = vsel %vm66, %v1289, 0.0
  %1298 = vadd.xlane.f32.xlu0 %v1297
  %v1299 = vpop.xlane.xlu0 %1298
  %v1300 = vsel %vm66, %v1290, 0.0
  %1301 = vadd.xlane.f32.xlu0 %v1300
  %v1302 = vpop.xlane.xlu0 %1301
  %v1307 = vlaneseq
  %v1308 = vshrl.u32 %v1307, 7
  %v1309 = vsub.s32 %v1133, %v1308
  %v1310 = vrot.slane %v1293, %v1309
  %v1311 = vlaneseq
  %v1312 = vshrl.u32 %v1311, 7
  %v1313 = vsub.s32 %v1138, %v1312
  %v1314 = vrot.slane %v1296, %v1313
  %v1315 = vsel %vm1143, %v1314, %v1310
  %v1316 = vlaneseq
  %v1317 = vshrl.u32 %v1316, 7
  %v1318 = vsub.s32 %v1133, %v1317
  %v1319 = vrot.slane %v1299, %v1318
  %v1320 = vlaneseq
  %v1321 = vshrl.u32 %v1320, 7
  %v1322 = vsub.s32 %v1138, %v1321
  %v1323 = vrot.slane %v1302, %v1322
  %v1324 = vsel %vm1143, %v1323, %v1319
  %v1325 = vsel %vm1154, %v1324, %v1315
  %v1327 = vsel %vm1157, %v1325, 0.0
  %1328 = vadd.xlane.f32.xlu0 %v1327
  %v1329 = vpop.xlane.xlu0 %1328
  %v1330 = vstv %s1286
  %v1331 = vadd.f32 %v1329, %v1330
  %v1332 = vmul.f32 %v1273, %v1284
  %v1333 = vmul.f32 %v1274, %v1285
  %v1334 = vmul.f32 %v1275, %v1284
  %v1335 = vmul.f32 %v1276, %v1285
  %v1336 = vsel %vm66, %v1332, 0.0
  %1337 = vadd.xlane.f32.xlu0 %v1336
  %v1338 = vpop.xlane.xlu0 %1337
  %v1339 = vsel %vm66, %v1333, 0.0
  %1340 = vadd.xlane.f32.xlu0 %v1339
  %v1341 = vpop.xlane.xlu0 %1340
  %v1342 = vsel %vm66, %v1334, 0.0
  %1343 = vadd.xlane.f32.xlu0 %v1342
  %v1344 = vpop.xlane.xlu0 %1343
  %v1345 = vsel %vm66, %v1335, 0.0
  %1346 = vadd.xlane.f32.xlu0 %v1345
  %v1347 = vpop.xlane.xlu0 %1346
  %v1352 = vlaneseq
  %v1353 = vshrl.u32 %v1352, 7
  %v1354 = vsub.s32 %v1133, %v1353
  %v1355 = vrot.slane %v1338, %v1354
  %v1356 = vlaneseq
  %v1357 = vshrl.u32 %v1356, 7
  %v1358 = vsub.s32 %v1138, %v1357
  %v1359 = vrot.slane %v1341, %v1358
  %v1360 = vsel %vm1143, %v1359, %v1355
  %v1361 = vlaneseq
  %v1362 = vshrl.u32 %v1361, 7
  %v1363 = vsub.s32 %v1133, %v1362
  %v1364 = vrot.slane %v1344, %v1363
  %v1365 = vlaneseq
  %v1366 = vshrl.u32 %v1365, 7
  %v1367 = vsub.s32 %v1138, %v1366
  %v1368 = vrot.slane %v1347, %v1367
  %v1369 = vsel %vm1143, %v1368, %v1364
  %v1370 = vsel %vm1154, %v1369, %v1360
  %v1372 = vsel %vm1157, %v1370, 0.0
  %1373 = vadd.xlane.f32.xlu0 %v1372
  %v1374 = vpop.xlane.xlu0 %1373
  %v1375 = vadd.f32 %v1374, %v1330
  %v1376 = vmul.f32 %v1280, %v1284
  %v1377 = vmul.f32 %v1281, %v1285
  %v1378 = vmul.f32 %v1282, %v1284
  %v1379 = vmul.f32 %v1283, %v1285
  %v1380 = vsel %vm66, %v1376, 0.0
  %1381 = vadd.xlane.f32.xlu0 %v1380
  %v1382 = vpop.xlane.xlu0 %1381
  %v1383 = vsel %vm66, %v1377, 0.0
  %1384 = vadd.xlane.f32.xlu0 %v1383
  %v1385 = vpop.xlane.xlu0 %1384
  %v1386 = vsel %vm66, %v1378, 0.0
  %1387 = vadd.xlane.f32.xlu0 %v1386
  %v1388 = vpop.xlane.xlu0 %1387
  %v1389 = vsel %vm66, %v1379, 0.0
  %1390 = vadd.xlane.f32.xlu0 %v1389
  %v1391 = vpop.xlane.xlu0 %1390
  %v1396 = vlaneseq
  %v1397 = vshrl.u32 %v1396, 7
  %v1398 = vsub.s32 %v1133, %v1397
  %v1399 = vrot.slane %v1382, %v1398
  %v1400 = vlaneseq
  %v1401 = vshrl.u32 %v1400, 7
  %v1402 = vsub.s32 %v1138, %v1401
  %v1403 = vrot.slane %v1385, %v1402
  %v1404 = vsel %vm1143, %v1403, %v1399
  %v1405 = vlaneseq
  %v1406 = vshrl.u32 %v1405, 7
  %v1407 = vsub.s32 %v1133, %v1406
  %v1408 = vrot.slane %v1388, %v1407
  %v1409 = vlaneseq
  %v1410 = vshrl.u32 %v1409, 7
  %v1411 = vsub.s32 %v1138, %v1410
  %v1412 = vrot.slane %v1391, %v1411
  %v1413 = vsel %vm1143, %v1412, %v1408
  %v1414 = vsel %vm1154, %v1413, %v1404
  %v1416 = vsel %vm1157, %v1414, 0.0
  %1417 = vadd.xlane.f32.xlu0 %v1416
  %v1418 = vpop.xlane.xlu0 %1417
  %v1419 = vadd.f32 %v1418, %v1330
  %v1420 = vmax.f32 %v1331, %v1375
  %v1421 = vmax.f32 %v1420, %v1419
  %v1422 = vsub.f32 %v1331, %v1421
  %v1423 = vmul.f32 %v1422, 1.442695
  %v1424 = vpow.pop %v1423
  %v1425 = vsub.f32 %v1375, %v1421
  %v1426 = vmul.f32 %v1425, 1.442695
  %v1427 = vpow.pop %v1426
  %v1428 = vsub.f32 %v1419, %v1421
  %v1429 = vmul.f32 %v1428, 1.442695
  %v1430 = vpow.pop %v1429
  %v1431 = vadd.f32 %v1424, %v1427
  %v1432 = vadd.f32 %v1431, %v1430
  %v1433 = vrcp.pop %v1432
  %v1434 = vmul.f32 %v1424, %v1433
  %v1436 = vlaneseq
  %v1437 = vshrl.u32 %v1436, 7
  %v1438 = vsub.s32 0, %v1437
  %v1439 = vrot.slane %v1434, %v1438
  %v1440 = vlaneseq
  %v1441 = vshrl.u32 %v1440, 7
  %v1442 = vsub.s32 1, %v1441
  %v1443 = vrot.slane %v1434, %v1442
  %v1446 = vmul.f32 %v1439, %v1266
  %v1447 = vmul.f32 %v1439, %v1267
  %v1448 = vmul.f32 %v1443, %v1268
  %v1449 = vmul.f32 %v1443, %v1269
  %v1450 = vmul.f32 %v1427, %v1433
  %v1452 = vlaneseq
  %v1453 = vshrl.u32 %v1452, 7
  %v1454 = vsub.s32 0, %v1453
  %v1455 = vrot.slane %v1450, %v1454
  %v1456 = vlaneseq
  %v1457 = vshrl.u32 %v1456, 7
  %v1458 = vsub.s32 1, %v1457
  %v1459 = vrot.slane %v1450, %v1458
  %v1462 = vmul.f32 %v1455, %v1273
  %v1463 = vmul.f32 %v1455, %v1274
  %v1464 = vmul.f32 %v1459, %v1275
  %v1465 = vmul.f32 %v1459, %v1276
  %v1466 = vadd.f32 %v1446, %v1462
  %v1467 = vadd.f32 %v1447, %v1463
  %v1468 = vadd.f32 %v1448, %v1464
  %v1469 = vadd.f32 %v1449, %v1465
  %v1470 = vmul.f32 %v1430, %v1433
  %v1472 = vlaneseq
  %v1473 = vshrl.u32 %v1472, 7
  %v1474 = vsub.s32 0, %v1473
  %v1475 = vrot.slane %v1470, %v1474
  %v1476 = vlaneseq
  %v1477 = vshrl.u32 %v1476, 7
  %v1478 = vsub.s32 1, %v1477
  %v1479 = vrot.slane %v1470, %v1478
  %v1482 = vmul.f32 %v1475, %v1280
  %v1483 = vmul.f32 %v1475, %v1281
  %v1484 = vmul.f32 %v1479, %v1282
  %v1485 = vmul.f32 %v1479, %v1283
  %v1486 = vadd.f32 %v1466, %v1482
  %v1487 = vadd.f32 %v1467, %v1483
  %v1488 = vadd.f32 %v1468, %v1484
  %v1489 = vadd.f32 %v1469, %v1485
  %vm1490 = vcmp.ge.f32.partialorder %v1248, 0.0
  %vm1491 = vcmp.ge.f32.partialorder %v1249, 0.0
  %vm1492 = vcmp.ge.f32.partialorder %v1250, 0.0
  %vm1493 = vcmp.ge.f32.partialorder %v1251, 0.0
  %v1494 = vmul.f32 %v1248, 0.01
  %v1495 = vmul.f32 %v1249, 0.01
  %v1496 = vmul.f32 %v1250, 0.01
  %v1497 = vmul.f32 %v1251, 0.01
  %v1498 = vsel %vm1490, %v1248, %v1494
  %v1499 = vsel %vm1491, %v1249, %v1495
  %v1500 = vsel %vm1492, %v1250, %v1496
  %v1501 = vsel %vm1493, %v1251, %v1497
  %v1502 = vld [vmem:[%s10] sm:$0xff]
  %v1503 = vld [vmem:[%s10 + $0x8] sm:$0xff]
  %v1504 = vld [vmem:[%s10 + $0x10] sm:$0xff]
  %v1505 = vld [vmem:[%s10 + $0x18] sm:$0xff]
  %v1507 = vsel %vm66, %v1498, 0
  %v1510 = vsel %vm66, %v1499, 0
  %v1513 = vsel %vm66, %v1500, 0
  %v1516 = vsel %vm66, %v1501, 0
  %1518 = vmatprep.subr.mxu0 0.0
  %1519 = vmatpush1.msra.mxu0 %v1502
  %1520 = vmatprep.subr.mxu0 0.0
  %1521 = vmatpush1.msra.mxu0 %v1503
  %1522 = vmatprep.subr.mxu0 0.0
  %1523 = vmatpush1.msra.mxu0 %v1504
  %1524 = vmatprep.subr.mxu0 0.0
  %1525 = vmatpush1.msra.mxu0 %v1505
  %1526 = vmatprep.subr.mxu0 0.0
  %1527 = vmatpush1.msra.mxu0 0.0
  %1528 = vmatprep.subr.mxu0 0.0
  %1529 = vmatpush1.msra.mxu0 0.0
  %1530 = vmatprep.subr.mxu0 0.0
  %1531 = vmatpush1.msra.mxu0 0.0
  %1532 = vmatprep.subr.mxu0 0.0
  %1533 = vmatpush1.msra.mxu0 0.0
  %1534 = vmatprep.subr.mxu0 0.0
  %1535 = vmatpush1.msra.mxu0 0.0
  %1536 = vmatprep.subr.mxu0 0.0
  %1537 = vmatpush1.msra.mxu0 0.0
  %1538 = vmatprep.subr.mxu0 0.0
  %1539 = vmatpush1.msra.mxu0 0.0
  %1540 = vmatprep.subr.mxu0 0.0
  %1541 = vmatpush1.msra.mxu0 0.0
  %1542 = vmatprep.subr.mxu0 0.0
  %1543 = vmatpush1.msra.mxu0 0.0
  %1544 = vmatprep.subr.mxu0 0.0
  %1545 = vmatpush1.msra.mxu0 0.0
  %1546 = vmatprep.subr.mxu0 0.0
  %1547 = vmatpush1.msra.mxu0 0.0
  %1548 = vmatprep.subr.mxu0 0.0
  %1549 = vmatpush1.msra.mxu0 0.0
  %1550 = vmatprep.subr.mxu0 0.0
  %1551 = vmatpush1.msra.mxu0 0.0
  %1552 = vmatprep.subr.mxu0 0.0
  %1553 = vmatpush1.msra.mxu0 0.0
  %1554 = vmatprep.subr.mxu0 0.0
  %1555 = vmatpush1.msra.mxu0 0.0
  %1556 = vmatprep.subr.mxu0 0.0
  %1557 = vmatpush1.msra.mxu0 0.0
  %1558 = vmatprep.subr.mxu0 0.0
  %1559 = vmatpush1.msra.mxu0 0.0
  %1560 = vmatprep.subr.mxu0 0.0
  %1561 = vmatpush1.msra.mxu0 0.0
  %1562 = vmatprep.subr.mxu0 0.0
  %1563 = vmatpush1.msra.mxu0 0.0
  %1564 = vmatprep.subr.mxu0 0.0
  %1565 = vmatpush1.msra.mxu0 0.0
  %1566 = vmatprep.subr.mxu0 0.0
  %1567 = vmatpush1.msra.mxu0 0.0
  %1568 = vmatprep.subr.mxu0 0.0
  %1569 = vmatpush1.msra.mxu0 0.0
  %1570 = vmatprep.subr.mxu0 0.0
  %1571 = vmatpush1.msra.mxu0 0.0
  %1572 = vmatprep.subr.mxu0 0.0
  %1573 = vmatpush1.msra.mxu0 0.0
  %1574 = vmatprep.subr.mxu0 0.0
  %1575 = vmatpush1.msra.mxu0 0.0
  %1576 = vmatprep.subr.mxu0 0.0
  %1577 = vmatpush1.msra.mxu0 0.0
  %1578 = vmatprep.subr.mxu0 0.0
  %1579 = vmatpush1.msra.mxu0 0.0
  %1580 = vmatprep.subr.mxu0 0.0
  %1581 = vmatpush1.msra.mxu0 0.0
  %1582 = vmatprep.mubr.f32.mxu0 0.0
  %1583 = vmatmul.mubr.f32.gmra.mrb[0].mxu0 %v1507
  %v1584 = vpop.f32.mrb[0].mxu0
  %v1585 = vadd.f32 0.0, %v1584
  %v1586 = vpop.f32.mrb[0].mxu0
  %1587 = vmatprep.mubr.f32.mxu0 0.0
  %1588 = vmatmul.mubr.f32.gmra.mrb[0].mxu0 %v1510
  %v1589 = vpop.f32.mrb[0].mxu0
  %v1590 = vadd.f32 0.0, %v1589
  %v1591 = vpop.f32.mrb[0].mxu0
  %1592 = vmatprep.mubr.f32.mxu0 0.0
  %1593 = vmatmul.mubr.f32.gmra.mrb[0].mxu0 %v1513
  %v1594 = vpop.f32.mrb[0].mxu0
  %v1595 = vadd.f32 0.0, %v1594
  %v1596 = vpop.f32.mrb[0].mxu0
  %1597 = vmatprep.mubr.f32.mxu0 0.0
  %1598 = vmatmul.mubr.f32.gmra.mrb[0].mxu0 %v1516
  %v1599 = vpop.f32.mrb[0].mxu0
  %v1600 = vadd.f32 0.0, %v1599
  %v1601 = vpop.f32.mrb[0].mxu0
  %1602 = vdwg.mxu0
  %v1603 = vld [vmem:[%s11] sm:$0xff]
  %v1604 = vld [vmem:[%s11 + $0x8] sm:$0xff]
  %v1605 = vadd.f32 %v1585, %v1603
  %v1606 = vadd.f32 %v1590, %v1604
  %v1607 = vadd.f32 %v1595, %v1603
  %v1608 = vadd.f32 %v1600, %v1604
  %v1609 = vadd.f32 %v1605, %v1486
  %v1610 = vadd.f32 %v1606, %v1487
  %v1611 = vadd.f32 %v1607, %v1488
  %v1612 = vadd.f32 %v1608, %v1489
  %1613 = vst.msk [vmem:[%s14] sm:$0xff] %vm66, %v1609
  %1614 = vst.msk [vmem:[%s14 + $0x8] sm:$0xff] %vm66, %v1610
  %1615 = vst.msk [vmem:[%s14 + $0x10] sm:$0xff] %vm66, %v1611
  %1616 = vst.msk [vmem:[%s14 + $0x18] sm:$0xff] %vm66, %v1612
  // Predicated region
  $region58: #{msdr_cell_forward.1} parent=0 // pred_check
    _
  $region59: #{msdr_cell_forward.1} parent=0 // pred_check_branch
    %1618 = sbr.rel (0) target = $region61
  $region60: #{msdr_cell_forward.1} parent=0 // pred_region
    _
  $region61: #{msdr_cell_forward.1} parent=0 // pred_fallthru
    _
  // Predicated region
  $region62: #{msdr_cell_forward.1} parent=0 // pred_check
    _
  $region63: #{msdr_cell_forward.1} parent=0 // pred_check_branch
    %1620 = sbr.rel (0) target = $region65
  $region64: #{msdr_cell_forward.1} parent=0 // pred_region
    _
  $region65: #{msdr_cell_forward.1} parent=0 // pred_fallthru
    _

</llo_original>
